<compile_context>
chip_gen: v5e
topology: v5e:2x2
jax: 0.10.0
libtpu: 0.0.40
codegen_flags: <defaults>
</compile_context>

<pallas_src>
import jax
import jax.numpy as jnp
from jax.experimental import pallas as pl
from jax.experimental.pallas import tpu as pltpu


def _discriminator_kernel(x_ref, w1_ref, b1_ref, w2_ref, b2_ref,
                          w3_ref, b3_ref, out_ref):
    # x tile arrives f32 (tb, D); cast to bf16 on the VPU right before the MXU
    # (cheaper than a separate full-array XLA cast pass through HBM).
    x = x_ref[...].astype(jnp.bfloat16)

    # Linear(D, 512) + LeakyReLU(0.2) -- MXU matmul, f32 accumulation.
    h1 = jnp.dot(x, w1_ref[...], preferred_element_type=jnp.float32) + b1_ref[...]
    h1 = jnp.maximum(h1, 0.2 * h1)                              # LeakyReLU(0.2)

    # Linear(512, 256) + LeakyReLU(0.2)
    h2 = jnp.dot(h1.astype(jnp.bfloat16), w2_ref[...],
                 preferred_element_type=jnp.float32) + b2_ref[...]
    h2 = jnp.maximum(h2, 0.2 * h2)

    # Linear(256, 1) computed as a row: (8,256) . (tb,256)^T -> (8, tb); only
    # row 0 of w3 is real (rows 1..7 are zero padding for sublane alignment).
    # This keeps the result lane-dense: full vregs for the sigmoid and an
    # unmasked (1, tb) store instead of a masked 1-lane column store.
    h3 = jax.lax.dot_general(
        w3_ref[...], h2,
        dimension_numbers=(((1,), (1,)), ((), ())),
        preferred_element_type=jnp.float32)[0:1, :]             # (1, tb)
    h3 = h3 + b3_ref[...]                                       # (1,1) broadcast

    # Exact sigmoid (EUP exp + VPU divide); stays in [0, 1] without clamping.
    out_ref[...] = (1.0 / (1.0 + jnp.exp(-h3))).astype(out_ref.dtype)


def _pick_batch_tile(batch, in_features):
    """Largest MXU-friendly batch tile in {1024, 512, 256, 128} that still
    leaves >= 2 tiles (so the "parallel" axis feeds both v7x TensorCores);
    128 floor for tiny batches; clamped so the double-buffered f32 x tile
    stays comfortably inside VMEM even for large flattened images."""
    tb = 128
    for cand in (1024, 512, 256):
        if pl.cdiv(batch, cand) >= 2:
            tb = cand
            break
    x_tile_budget = 12 * 1024 * 1024                 # bytes for the 2 x buffers
    cap = max(128, (x_tile_budget // (8 * in_features)) // 128 * 128)
    return min(tb, cap)


def discriminator_forward(img, params):
    """img: (B, C, H, W) float32.  Returns validity scores of shape (B, 1)."""
    w1, b1, w2, b2, w3, b3 = params
    B = img.shape[0]
    D = w1.shape[0]
    x = img.reshape(B, -1)                           # (B, D) f32 -- no cast here
    assert x.shape[1] == D

    tb = _pick_batch_tile(B, D)
    n_tiles = pl.cdiv(B, tb)
    b_pad = n_tiles * tb
    if b_pad != B:                                   # only for ragged batches
        x = jnp.pad(x, ((0, b_pad - B), (0, 0)))

    # Weights on the MXU path in bf16; last layer + biases stay f32 (VPU/EUP).
    w1b = w1.astype(jnp.bfloat16)
    w2b = w2.astype(jnp.bfloat16)
    # w3 as a (8, 256) f32 row block: row 0 = w3^T, rows 1..7 zero padding.
    w3r = jnp.zeros((8, w3.shape[0]), jnp.float32).at[0].set(
        w3.reshape(-1).astype(jnp.float32))
    b1f = b1.astype(jnp.float32)
    b2f = b2.astype(jnp.float32)
    b3f = b3.reshape(1, 1).astype(jnp.float32)

    # Constant index_map => weights/biases are DMA'd once and stay VMEM
    # resident.  Single-buffer them only when D is big enough for the default
    # double-buffering to matter (irrelevant at D=256, matters at D ~ 12K on
    # v7x's 64 MiB VMEM).
    single_buffer = D >= 4096
    def resident(shape):
        idx = lambda i: tuple(0 for _ in shape)
        if single_buffer:
            return pl.BlockSpec(shape, idx, pipeline_mode=pl.Buffered(1))
        return pl.BlockSpec(shape, idx)

    out = pl.pallas_call(
        _discriminator_kernel,
        # Lane-dense output: one (1, tb) row per tile -> (1, b_pad) slab.
        out_shape=jax.ShapeDtypeStruct((1, b_pad), jnp.float32),
        grid=(n_tiles,),
        in_specs=[
            pl.BlockSpec((tb, D), lambda i: (i, 0)),   # x tiles stream (f32)
            resident(w1b.shape), resident(b1f.shape),
            resident(w2b.shape), resident(b2f.shape),
            resident(w3r.shape), resident(b3f.shape),
        ],
        out_specs=pl.BlockSpec((1, tb), lambda i: (0, i)),
        compiler_params=pltpu.CompilerParams(
            # Shard batch tiles across v7x's 2 TensorCores; harmless on v5e/v6e.
            dimension_semantics=("parallel",),
            # Explicit budget: fits v7x's 64 MiB VMEM as well as v5e/v6e's 128 MiB.
            vmem_limit_bytes=32 * 1024 * 1024,
        ),
    )(x, w1b, b1f, w2b, b2f, w3r, b3f)

    return out[0, :B].reshape(B, 1)


def discriminator_reference(img, params):
    """Pure-JAX f32 reference matching the PyTorch module."""
    w1, b1, w2, b2, w3, b3 = params
    x = img.reshape(img.shape[0], -1)
    h1 = jax.nn.leaky_relu(x @ w1 + b1, negative_slope=0.2)
    h2 = jax.nn.leaky_relu(h1 @ w2 + b2, negative_slope=0.2)
    return jax.nn.sigmoid(h2 @ w3 + b3)


def init_params(key, in_features):
    """Deterministic init matching the module's layer shapes.

    Weights stored as (in, out); biases as (1, out) for 2-D TPU layout.
    """
    dims = [(in_features, 512), (512, 256), (256, 1)]
    params = []
    for fan_in, fan_out in dims:
        kw, kb, key = jax.random.split(key, 3)
        bound = 1.0 / (fan_in ** 0.5)
        w = jax.random.uniform(kw, (fan_in, fan_out), jnp.float32, -bound, bound)
        b = jax.random.uniform(kb, (1, fan_out), jnp.float32, -bound, bound)
        params += [w, b]
    return tuple(params)


if __name__ == "__main__":
    key = jax.random.PRNGKey(0)
    k_img, k_par, k_big = jax.random.split(key, 3)

    # Small image shape consistent with the module: img_shape = (1, 16, 16).
    B, C, H, W = 2, 1, 16, 16
    img = jax.random.normal(k_img, (B, C, H, W), dtype=jnp.float32)
    params = init_params(k_par, C * H * W)

    validity = discriminator_forward(img, params)
    jax.block_until_ready(validity)

    assert validity.shape == (B, 1)
    assert bool(jnp.all((validity >= 0.0) & (validity <= 1.0)))

    # bf16 matmul path -> relaxed tolerance vs. the f32 reference.
    ref = discriminator_reference(img, params)
    assert bool(jnp.allclose(validity, ref, atol=3e-2, rtol=3e-2)), (
        f"max abs err {float(jnp.max(jnp.abs(validity - ref)))}")

    # Second check: multi-tile grid + ragged (padded) batch + lane-dense
    # output stitching across tiles (B=384 -> tb=256, 2 tiles, pad to 512).
    B2 = 384
    img2 = jax.random.normal(k_big, (B2, C, H, W), dtype=jnp.float32)
    validity2 = discriminator_forward(img2, params)
    jax.block_until_ready(validity2)
    assert validity2.shape == (B2, 1)
    ref2 = discriminator_reference(img2, params)
    assert bool(jnp.allclose(validity2, ref2, atol=3e-2, rtol=3e-2)), (
        f"max abs err {float(jnp.max(jnp.abs(validity2 - ref2)))}")

    print("KERNEL_OK")
</pallas_src>

<mosaic_0001>
module attributes {stable_mosaic.version = 11 : i64} {
  func.func @_discriminator_kernel(%arg0: i32, %arg1: memref<128x256xf32, #tpu.memory_space<vmem>>, %arg2: memref<256x512xbf16, #tpu.memory_space<vmem>>, %arg3: memref<1x512xf32, #tpu.memory_space<vmem>>, %arg4: memref<512x256xbf16, #tpu.memory_space<vmem>>, %arg5: memref<1x256xf32, #tpu.memory_space<vmem>>, %arg6: memref<8x256xf32, #tpu.memory_space<vmem>>, %arg7: memref<1x1xf32, #tpu.memory_space<vmem>>, %arg8: memref<1x128xf32, #tpu.memory_space<vmem>>) attributes {dimension_semantics = [#tpu.dimension_semantics<parallel>], iteration_bounds = array<i64: 1>, scalar_prefetch = 0 : i64, scratch_operands = 0 : i64, tpu.core_type = #tpu.core_type<tc>, window_params = [{transform_indices = @transform_0, window_bounds = array<i64: 128, 256>}, {pipeline_mode = #tpu.pipeline_mode<synchronous>, transform_indices = @transform_1, window_bounds = array<i64: 256, 512>}, {pipeline_mode = #tpu.pipeline_mode<synchronous>, transform_indices = @transform_2, window_bounds = array<i64: 1, 512>}, {pipeline_mode = #tpu.pipeline_mode<synchronous>, transform_indices = @transform_3, window_bounds = array<i64: 512, 256>}, {pipeline_mode = #tpu.pipeline_mode<synchronous>, transform_indices = @transform_4, window_bounds = array<i64: 1, 256>}, {pipeline_mode = #tpu.pipeline_mode<synchronous>, transform_indices = @transform_5, window_bounds = array<i64: 8, 256>}, {pipeline_mode = #tpu.pipeline_mode<synchronous>, transform_indices = @transform_6, window_bounds = array<i64: 1, 1>}, {transform_indices = @transform_7, window_bounds = array<i64: 1, 128>}]} {
    %c0 = arith.constant 0 : index
    %c0_0 = arith.constant 0 : index
    %0 = vector.load %arg1[%c0, %c0_0] : memref<128x256xf32, #tpu.memory_space<vmem>>, vector<128x256xf32>
    %1 = arith.truncf %0 : vector<128x256xf32> to vector<128x256xbf16>
    %c0_1 = arith.constant 0 : index
    %c0_2 = arith.constant 0 : index
    %2 = vector.load %arg2[%c0_1, %c0_2] : memref<256x512xbf16, #tpu.memory_space<vmem>>, vector<256x512xbf16>
    %cst = arith.constant dense<0.000000e+00> : vector<128x512xf32>
    %3 = tpu.matmul %1, %2, %cst {dimension_numbers = #tpu.dot_dimension_numbers<[1], [0], [0], [1], [0, 0, 1, 1], [], []>} : vector<128x256xbf16>, vector<256x512xbf16>, vector<128x512xf32> -> vector<128x512xf32>
    %c0_3 = arith.constant 0 : index
    %c0_4 = arith.constant 0 : index
    %4 = vector.load %arg3[%c0_3, %c0_4] : memref<1x512xf32, #tpu.memory_space<vmem>>, vector<1x512xf32>
    %5 = vector.broadcast %4 : vector<1x512xf32> to vector<128x512xf32>
    %6 = arith.addf %3, %5 : vector<128x512xf32>
    %cst_5 = arith.constant 2.000000e-01 : f32
    %7 = vector.broadcast %cst_5 : f32 to vector<128x512xf32>
    %8 = arith.mulf %7, %6 : vector<128x512xf32>
    %9 = arith.maximumf %6, %8 : vector<128x512xf32>
    %10 = arith.truncf %9 : vector<128x512xf32> to vector<128x512xbf16>
    %c0_6 = arith.constant 0 : index
    %c0_7 = arith.constant 0 : index
    %11 = vector.load %arg4[%c0_6, %c0_7] : memref<512x256xbf16, #tpu.memory_space<vmem>>, vector<512x256xbf16>
    %cst_8 = arith.constant dense<0.000000e+00> : vector<128x256xf32>
    %12 = tpu.matmul %10, %11, %cst_8 {dimension_numbers = #tpu.dot_dimension_numbers<[1], [0], [0], [1], [0, 0, 1, 1], [], []>} : vector<128x512xbf16>, vector<512x256xbf16>, vector<128x256xf32> -> vector<128x256xf32>
    %c0_9 = arith.constant 0 : index
    %c0_10 = arith.constant 0 : index
    %13 = vector.load %arg5[%c0_9, %c0_10] : memref<1x256xf32, #tpu.memory_space<vmem>>, vector<1x256xf32>
    %14 = vector.broadcast %13 : vector<1x256xf32> to vector<128x256xf32>
    %15 = arith.addf %12, %14 : vector<128x256xf32>
    %cst_11 = arith.constant 2.000000e-01 : f32
    %16 = vector.broadcast %cst_11 : f32 to vector<128x256xf32>
    %17 = arith.mulf %16, %15 : vector<128x256xf32>
    %18 = arith.maximumf %15, %17 : vector<128x256xf32>
    %c0_12 = arith.constant 0 : index
    %c0_13 = arith.constant 0 : index
    %19 = vector.load %arg6[%c0_12, %c0_13] : memref<8x256xf32, #tpu.memory_space<vmem>>, vector<8x256xf32>
    %cst_14 = arith.constant dense<0.000000e+00> : vector<8x128xf32>
    %20 = tpu.matmul %19, %18, %cst_14 {dimension_numbers = #tpu.dot_dimension_numbers<[1], [1], [0], [0], [0, 0, 1, 0], [], []>} : vector<8x256xf32>, vector<128x256xf32>, vector<8x128xf32> -> vector<8x128xf32>
    %21 = vector.extract_strided_slice %20 {offsets = [0, 0], sizes = [1, 128], strides = [1, 1]} : vector<8x128xf32> to vector<1x128xf32>
    %c0_15 = arith.constant 0 : index
    %c0_16 = arith.constant 0 : index
    %22 = vector.load %arg7[%c0_15, %c0_16] : memref<1x1xf32, #tpu.memory_space<vmem>>, vector<1x1xf32>
    %23 = vector.broadcast %22 : vector<1x1xf32> to vector<1x128xf32>
    %24 = arith.addf %21, %23 : vector<1x128xf32>
    %cst_17 = arith.constant 0.000000e+00 : f32
    %25 = vector.broadcast %cst_17 : f32 to vector<1x128xf32>
    %26 = arith.subf %25, %24 : vector<1x128xf32>
    %27 = math.exp %26 : vector<1x128xf32>
    %cst_18 = arith.constant 1.000000e+00 : f32
    %28 = vector.broadcast %cst_18 : f32 to vector<1x128xf32>
    %29 = arith.addf %28, %27 : vector<1x128xf32>
    %cst_19 = arith.constant 1.000000e+00 : f32
    %30 = vector.broadcast %cst_19 : f32 to vector<1x128xf32>
    %31 = arith.divf %30, %29 : vector<1x128xf32>
    %c0_20 = arith.constant 0 : index
    %c0_21 = arith.constant 0 : index
    %32 = vector.load %arg8[%c0_20, %c0_21] : memref<1x128xf32, #tpu.memory_space<vmem>>, vector<1x128xf32>
    tpu.vector_store %arg8[%c0_20, %c0_21], %31 {strides = array<i32>} : memref<1x128xf32, #tpu.memory_space<vmem>>, vector<1x128xf32>,
    return
  }
  func.func @transform_0(%arg0: i32) -> (i32, i32) {
    %c0_i32 = arith.constant 0 : i32
    %c0_i32_0 = arith.constant 0 : i32
    return %arg0, %c0_i32 : i32, i32
  }
  func.func @transform_1(%arg0: i32) -> (i32, i32) {
    %c0_i32 = arith.constant 0 : i32
    %c0_i32_0 = arith.constant 0 : i32
    %c0_i32_1 = arith.constant 0 : i32
    return %c0_i32, %c0_i32_0 : i32, i32
  }
  func.func @transform_2(%arg0: i32) -> (i32, i32) {
    %c0_i32 = arith.constant 0 : i32
    %c0_i32_0 = arith.constant 0 : i32
    %c0_i32_1 = arith.constant 0 : i32
    return %c0_i32, %c0_i32_0 : i32, i32
  }
  func.func @transform_3(%arg0: i32) -> (i32, i32) {
    %c0_i32 = arith.constant 0 : i32
    %c0_i32_0 = arith.constant 0 : i32
    %c0_i32_1 = arith.constant 0 : i32
    return %c0_i32, %c0_i32_0 : i32, i32
  }
  func.func @transform_4(%arg0: i32) -> (i32, i32) {
    %c0_i32 = arith.constant 0 : i32
    %c0_i32_0 = arith.constant 0 : i32
    %c0_i32_1 = arith.constant 0 : i32
    return %c0_i32, %c0_i32_0 : i32, i32
  }
  func.func @transform_5(%arg0: i32) -> (i32, i32) {
    %c0_i32 = arith.constant 0 : i32
    %c0_i32_0 = arith.constant 0 : i32
    %c0_i32_1 = arith.constant 0 : i32
    return %c0_i32, %c0_i32_0 : i32, i32
  }
  func.func @transform_6(%arg0: i32) -> (i32, i32) {
    %c0_i32 = arith.constant 0 : i32
    %c0_i32_0 = arith.constant 0 : i32
    %c0_i32_1 = arith.constant 0 : i32
    return %c0_i32, %c0_i32_0 : i32, i32
  }
  func.func @transform_7(%arg0: i32) -> (i32, i32) {
    %c0_i32 = arith.constant 0 : i32
    %c0_i32_0 = arith.constant 0 : i32
    return %c0_i32, %arg0 : i32, i32
  }
}

</mosaic_0001>

<llo_original>
// kernel: tpu_custom_call.1
$region0: #{tpu_custom_call.1}
  #allocation0 [shape = 'u32[]', space=smem, size = 0x4, offset = 0x4, fixed_abs, tag = 'smem constant byte address 0x4 - core index']
  #allocation1 [shape = 'u32[72,128]{1,0:T(1,128)}', space=vmem, size = 0x9000, scoped, tag = 'internal scratch']
  #allocation2 [shape = 'f32[1,1]{1,0:T(1,128)S(1)}', space=vmem, size = 0x200, scoped, tag = 'scoped memory for tpu_custom_call.1']
  %s0 = inlined_call_operand.hbm [shape: f32[128,256], index: 0, kind: input, shape index: {}]
  %s1 = inlined_call_operand.hbm [shape: bf16[256,512], index: 1, kind: input, shape index: {}]
  %s2 = inlined_call_operand.hbm [shape: f32[1,512], index: 2, kind: input, shape index: {}]
  %s3 = inlined_call_operand.hbm [shape: bf16[512,256], index: 3, kind: input, shape index: {}]
  %s4 = inlined_call_operand.vmem [shape: f32[1,256], index: 4, kind: input, shape index: {}]
  %s5 = inlined_call_operand.hbm [shape: f32[8,256], index: 5, kind: input, shape index: {}]
  %s6 = inlined_call_operand.<no memory space> [shape: f32[1,1], index: 6, kind: input, shape index: {}]
  %s7 = inlined_call_operand.hbm [shape: f32[1,128], index: 7, kind: output, shape index: {}]
  %s8 = sld [smem:[#allocation0]]
  $region58: #{tpu_custom_call.1} parent=0
    _
  %s10 = ssub.s32 1, %s8
  %s11 = scalar_select 0, %s10, %s8
  %v12 = vstv %s6
  %13 = vst [vmem:[#allocation2] sm:$0x1] %v12
  $region1: #{tpu_custom_call.1} parent=0
    #allocation3 [shape = 'u8[131072]{0}', space=vmem, size = 0x20000, scoped, tag = 'input window, operand 0, single buffered']
    #allocation4 [shape = 's32[1]{0}', space=sflag, size = 0x4, scoped, tag = 'scoped memory for tpu_custom_call.1']
    #allocation5 [shape = 's32[1]{0}', space=sflag, size = 0x4, scoped, tag = 'scoped memory for tpu_custom_call.1']
    #allocation6 [shape = 'u8[262144]{0}', space=vmem, size = 0x40000, scoped, tag = 'input window, operand 1, single buffered']
    #allocation7 [shape = 's32[1]{0}', space=sflag, size = 0x4, scoped, tag = 'scoped memory for tpu_custom_call.1']
    #allocation8 [shape = 'u8[2048]{0}', space=vmem, size = 0x800, scoped, tag = 'input window, operand 2, single buffered']
    #allocation9 [shape = 'u8[262144]{0}', space=vmem, size = 0x40000, scoped, tag = 'input window, operand 3, single buffered']
    #allocation10 [shape = 's32[1]{0}', space=sflag, size = 0x4, scoped, tag = 'scoped memory for tpu_custom_call.1']
    #allocation11 [shape = 'u8[8192]{0}', space=vmem, size = 0x2000, scoped, tag = 'input window, operand 5, single buffered']
    #allocation12 [shape = 'u8[512]{0}', space=vmem, size = 0x400, scoped, tag = 'output window, operand 0, single buffered']
    %14 = vsyncpa [#allocation4], 0
    %15 = vsyncpa [#allocation7], 0
    %16 = vsyncpa [#allocation10], 0
    %17 = vsyncpa [#allocation5], 0
    // Predicated region
    $region2: #{tpu_custom_call.1} parent=1 // pred_check
      _
    $region3: #{tpu_custom_call.1} parent=1 // pred_check_branch
      %19 = sbr.rel (0) target = $region5
    $region4: #{tpu_custom_call.1} parent=1 // pred_region
      %21 = vsyncadd [#allocation4], 0
      %s22 = sshll.u32 %s0, 4
      %s23 = int_to_ptr.hbm [resolvable:$true] %s22
      %s24 = sshll.u32 [#allocation3], 4
      %s25 = int_to_ptr.vmem [resolvable:$true] %s24
      %30 = dma.hbm_to_vmem [thread:$0]  %s23, 4096, %s25, [#allocation4], 256, 256, 16
    $region5: #{tpu_custom_call.1} parent=1 // pred_fallthru
      _
    // Predicated region
    $region6: #{tpu_custom_call.1} parent=1 // pred_check
      _
    $region7: #{tpu_custom_call.1} parent=1 // pred_check_branch
      %32 = sbr.rel (0) target = $region9
    $region8: #{tpu_custom_call.1} parent=1 // pred_region
      %34 = vsyncadd [#allocation7], 0
      %s35 = sshll.u32 %s1, 4
      %s36 = int_to_ptr.hbm [resolvable:$true] %s35
      %s37 = sshll.u32 [#allocation6], 4
      %s38 = int_to_ptr.vmem [resolvable:$true] %s37
      %43 = dma.hbm_to_vmem [thread:$0]  %s36, 8192, %s38, [#allocation7], 256, 256, 16
    $region9: #{tpu_custom_call.1} parent=1 // pred_fallthru
      _
    // Predicated region
    $region10: #{tpu_custom_call.1} parent=1 // pred_check
      _
    $region11: #{tpu_custom_call.1} parent=1 // pred_check_branch
      %45 = sbr.rel (0) target = $region13
    $region12: #{tpu_custom_call.1} parent=1 // pred_region
      %47 = vsyncadd [#allocation7], 0
      %s49 = sshll.u32 %s2, 4
      %s50 = int_to_ptr.hbm [resolvable:$true] %s49
      %s51 = sshll.u32 [#allocation8], 4
      %s52 = int_to_ptr.vmem [resolvable:$true] %s51
      %54 = dma.hbm_to_vmem [thread:$0]  %s50, 64, %s52, [#allocation7]
    $region13: #{tpu_custom_call.1} parent=1 // pred_fallthru
      _
    // Predicated region
    $region14: #{tpu_custom_call.1} parent=1 // pred_check
      _
    $region15: #{tpu_custom_call.1} parent=1 // pred_check_branch
      %56 = sbr.rel (0) target = $region17
    $region16: #{tpu_custom_call.1} parent=1 // pred_region
      %58 = vsyncadd [#allocation10], 0
      %s59 = sshll.u32 %s3, 4
      %s60 = int_to_ptr.hbm [resolvable:$true] %s59
      %s61 = sshll.u32 [#allocation9], 4
      %s62 = int_to_ptr.vmem [resolvable:$true] %s61
      %67 = dma.hbm_to_vmem [thread:$0]  %s60, 8192, %s62, [#allocation10], 128, 128, 8
    $region17: #{tpu_custom_call.1} parent=1 // pred_fallthru
      _
    // Predicated region
    $region18: #{tpu_custom_call.1} parent=1 // pred_check
      _
    $region19: #{tpu_custom_call.1} parent=1 // pred_check_branch
      %69 = sbr.rel (0) target = $region21
    $region20: #{tpu_custom_call.1} parent=1 // pred_region
      _
    $region21: #{tpu_custom_call.1} parent=1 // pred_fallthru
      _
    // Predicated region
    $region22: #{tpu_custom_call.1} parent=1 // pred_check
      _
    $region23: #{tpu_custom_call.1} parent=1 // pred_check_branch
      %71 = sbr.rel (0) target = $region25
    $region24: #{tpu_custom_call.1} parent=1 // pred_region
      %73 = vsyncadd [#allocation10], 0
      %s75 = sshll.u32 %s5, 4
      %s76 = int_to_ptr.hbm [resolvable:$true] %s75
      %s77 = sshll.u32 [#allocation11], 4
      %s78 = int_to_ptr.vmem [resolvable:$true] %s77
      %80 = dma.hbm_to_vmem [thread:$0]  %s76, 256, %s78, [#allocation10]
    $region25: #{tpu_custom_call.1} parent=1 // pred_fallthru
      _
    // Predicated region
    $region26: #{tpu_custom_call.1} parent=1 // pred_check
      _
    $region27: #{tpu_custom_call.1} parent=1 // pred_check_branch
      %82 = sbr.rel (0) target = $region29
    $region28: #{tpu_custom_call.1} parent=1 // pred_region
      _
    $region29: #{tpu_custom_call.1} parent=1 // pred_fallthru
      _
    // Predicated region
    $region30: #{tpu_custom_call.1} parent=1 // pred_check
      _
    $region31: #{tpu_custom_call.1} parent=1 // pred_check_branch
      %84 = sbr.rel (0) target = $region33
    $region32: #{tpu_custom_call.1} parent=1 // pred_region
      %86 = dma.done [#allocation4], 4096
    $region33: #{tpu_custom_call.1} parent=1 // pred_fallthru
      _
    // Predicated region
    $region34: #{tpu_custom_call.1} parent=1 // pred_check
      _
    $region35: #{tpu_custom_call.1} parent=1 // pred_check_branch
      %88 = sbr.rel (0) target = $region37
    $region36: #{tpu_custom_call.1} parent=1 // pred_region
      %90 = dma.done [#allocation7], 8192
    $region37: #{tpu_custom_call.1} parent=1 // pred_fallthru
      _
    // Predicated region
    $region38: #{tpu_custom_call.1} parent=1 // pred_check
      _
    $region39: #{tpu_custom_call.1} parent=1 // pred_check_branch
      %92 = sbr.rel (0) target = $region41
    $region40: #{tpu_custom_call.1} parent=1 // pred_region
      %94 = dma.done [#allocation7], 64
    $region41: #{tpu_custom_call.1} parent=1 // pred_fallthru
      _
    // Predicated region
    $region42: #{tpu_custom_call.1} parent=1 // pred_check
      _
    $region43: #{tpu_custom_call.1} parent=1 // pred_check_branch
      %96 = sbr.rel (0) target = $region45
    $region44: #{tpu_custom_call.1} parent=1 // pred_region
      %98 = dma.done [#allocation10], 8192
    $region45: #{tpu_custom_call.1} parent=1 // pred_fallthru
      _
    // Predicated region
    $region46: #{tpu_custom_call.1} parent=1 // pred_check
      _
    $region47: #{tpu_custom_call.1} parent=1 // pred_check_branch
      %100 = sbr.rel (0) target = $region49
    $region48: #{tpu_custom_call.1} parent=1 // pred_region
      %102 = dma.done [#allocation10], 256
    $region49: #{tpu_custom_call.1} parent=1 // pred_fallthru
      _
    %v103 = vld [vmem:[#allocation3] sm:$0xff]
    %v104 = vld [vmem:[#allocation3 + $0x8] sm:$0xff]
    %v105 = vld [vmem:[#allocation3 + $0x10] sm:$0xff]
    %v106 = vld [vmem:[#allocation3 + $0x18] sm:$0xff]
    %v107 = vld [vmem:[#allocation3 + $0x20] sm:$0xff]
    %v108 = vld [vmem:[#allocation3 + $0x28] sm:$0xff]
    %v109 = vld [vmem:[#allocation3 + $0x30] sm:$0xff]
    %v110 = vld [vmem:[#allocation3 + $0x38] sm:$0xff]
    %v111 = vld [vmem:[#allocation3 + $0x40] sm:$0xff]
    %v112 = vld [vmem:[#allocation3 + $0x48] sm:$0xff]
    %v113 = vld [vmem:[#allocation3 + $0x50] sm:$0xff]
    %v114 = vld [vmem:[#allocation3 + $0x58] sm:$0xff]
    %v115 = vld [vmem:[#allocation3 + $0x60] sm:$0xff]
    %v116 = vld [vmem:[#allocation3 + $0x68] sm:$0xff]
    %v117 = vld [vmem:[#allocation3 + $0x70] sm:$0xff]
    %v118 = vld [vmem:[#allocation3 + $0x78] sm:$0xff]
    %v119 = vld [vmem:[#allocation3 + $0x80] sm:$0xff]
    %v120 = vld [vmem:[#allocation3 + $0x88] sm:$0xff]
    %v121 = vld [vmem:[#allocation3 + $0x90] sm:$0xff]
    %v122 = vld [vmem:[#allocation3 + $0x98] sm:$0xff]
    %v123 = vld [vmem:[#allocation3 + $0xa0] sm:$0xff]
    %v124 = vld [vmem:[#allocation3 + $0xa8] sm:$0xff]
    %v125 = vld [vmem:[#allocation3 + $0xb0] sm:$0xff]
    %v126 = vld [vmem:[#allocation3 + $0xb8] sm:$0xff]
    %v127 = vld [vmem:[#allocation3 + $0xc0] sm:$0xff]
    %v128 = vld [vmem:[#allocation3 + $0xc8] sm:$0xff]
    %v129 = vld [vmem:[#allocation3 + $0xd0] sm:$0xff]
    %v130 = vld [vmem:[#allocation3 + $0xd8] sm:$0xff]
    %v131 = vld [vmem:[#allocation3 + $0xe0] sm:$0xff]
    %v132 = vld [vmem:[#allocation3 + $0xe8] sm:$0xff]
    %v133 = vld [vmem:[#allocation3 + $0xf0] sm:$0xff]
    %v134 = vld [vmem:[#allocation3 + $0xf8] sm:$0xff]
    %v135 = vpack.c.bf16 %v105, %v103
    %v136 = vpack.c.bf16 %v106, %v104
    %v137 = vpack.c.bf16 %v109, %v107
    %v138 = vpack.c.bf16 %v110, %v108
    %v139 = vpack.c.bf16 %v113, %v111
    %v140 = vpack.c.bf16 %v114, %v112
    %v141 = vpack.c.bf16 %v117, %v115
    %v142 = vpack.c.bf16 %v118, %v116
    %v143 = vpack.c.bf16 %v121, %v119
    %v144 = vpack.c.bf16 %v122, %v120
    %v145 = vpack.c.bf16 %v125, %v123
    %v146 = vpack.c.bf16 %v126, %v124
    %v147 = vpack.c.bf16 %v129, %v127
    %v148 = vpack.c.bf16 %v130, %v128
    %v149 = vpack.c.bf16 %v133, %v131
    %v150 = vpack.c.bf16 %v134, %v132
    %v151 = vld [vmem:[#allocation6] sm:$0xff]
    %v152 = vld [vmem:[#allocation6 + $0x8] sm:$0xff]
    %v153 = vld [vmem:[#allocation6 + $0x10] sm:$0xff]
    %v154 = vld [vmem:[#allocation6 + $0x18] sm:$0xff]
    %v155 = vld [vmem:[#allocation6 + $0x20] sm:$0xff]
    %v156 = vld [vmem:[#allocation6 + $0x28] sm:$0xff]
    %v157 = vld [vmem:[#allocation6 + $0x30] sm:$0xff]
    %v158 = vld [vmem:[#allocation6 + $0x38] sm:$0xff]
    %v159 = vld [vmem:[#allocation6 + $0x40] sm:$0xff]
    %v160 = vld [vmem:[#allocation6 + $0x48] sm:$0xff]
    %v161 = vld [vmem:[#allocation6 + $0x50] sm:$0xff]
    %v162 = vld [vmem:[#allocation6 + $0x58] sm:$0xff]
    %v163 = vld [vmem:[#allocation6 + $0x60] sm:$0xff]
    %v164 = vld [vmem:[#allocation6 + $0x68] sm:$0xff]
    %v165 = vld [vmem:[#allocation6 + $0x70] sm:$0xff]
    %v166 = vld [vmem:[#allocation6 + $0x78] sm:$0xff]
    %v167 = vld [vmem:[#allocation6 + $0x80] sm:$0xff]
    %v168 = vld [vmem:[#allocation6 + $0x88] sm:$0xff]
    %v169 = vld [vmem:[#allocation6 + $0x90] sm:$0xff]
    %v170 = vld [vmem:[#allocation6 + $0x98] sm:$0xff]
    %v171 = vld [vmem:[#allocation6 + $0xa0] sm:$0xff]
    %v172 = vld [vmem:[#allocation6 + $0xa8] sm:$0xff]
    %v173 = vld [vmem:[#allocation6 + $0xb0] sm:$0xff]
    %v174 = vld [vmem:[#allocation6 + $0xb8] sm:$0xff]
    %v175 = vld [vmem:[#allocation6 + $0xc0] sm:$0xff]
    %v176 = vld [vmem:[#allocation6 + $0xc8] sm:$0xff]
    %v177 = vld [vmem:[#allocation6 + $0xd0] sm:$0xff]
    %v178 = vld [vmem:[#allocation6 + $0xd8] sm:$0xff]
    %v179 = vld [vmem:[#allocation6 + $0xe0] sm:$0xff]
    %v180 = vld [vmem:[#allocation6 + $0xe8] sm:$0xff]
    %v181 = vld [vmem:[#allocation6 + $0xf0] sm:$0xff]
    %v182 = vld [vmem:[#allocation6 + $0xf8] sm:$0xff]
    %v183 = vld [vmem:[#allocation6 + $0x100] sm:$0xff]
    %v184 = vld [vmem:[#allocation6 + $0x108] sm:$0xff]
    %v185 = vld [vmem:[#allocation6 + $0x110] sm:$0xff]
    %v186 = vld [vmem:[#allocation6 + $0x118] sm:$0xff]
    %v187 = vld [vmem:[#allocation6 + $0x120] sm:$0xff]
    %v188 = vld [vmem:[#allocation6 + $0x128] sm:$0xff]
    %v189 = vld [vmem:[#allocation6 + $0x130] sm:$0xff]
    %v190 = vld [vmem:[#allocation6 + $0x138] sm:$0xff]
    %v191 = vld [vmem:[#allocation6 + $0x140] sm:$0xff]
    %v192 = vld [vmem:[#allocation6 + $0x148] sm:$0xff]
    %v193 = vld [vmem:[#allocation6 + $0x150] sm:$0xff]
    %v194 = vld [vmem:[#allocation6 + $0x158] sm:$0xff]
    %v195 = vld [vmem:[#allocation6 + $0x160] sm:$0xff]
    %v196 = vld [vmem:[#allocation6 + $0x168] sm:$0xff]
    %v197 = vld [vmem:[#allocation6 + $0x170] sm:$0xff]
    %v198 = vld [vmem:[#allocation6 + $0x178] sm:$0xff]
    %v199 = vld [vmem:[#allocation6 + $0x180] sm:$0xff]
    %v200 = vld [vmem:[#allocation6 + $0x188] sm:$0xff]
    %v201 = vld [vmem:[#allocation6 + $0x190] sm:$0xff]
    %v202 = vld [vmem:[#allocation6 + $0x198] sm:$0xff]
    %v203 = vld [vmem:[#allocation6 + $0x1a0] sm:$0xff]
    %v204 = vld [vmem:[#allocation6 + $0x1a8] sm:$0xff]
    %v205 = vld [vmem:[#allocation6 + $0x1b0] sm:$0xff]
    %v206 = vld [vmem:[#allocation6 + $0x1b8] sm:$0xff]
    %v207 = vld [vmem:[#allocation6 + $0x1c0] sm:$0xff]
    %v208 = vld [vmem:[#allocation6 + $0x1c8] sm:$0xff]
    %v209 = vld [vmem:[#allocation6 + $0x1d0] sm:$0xff]
    %v210 = vld [vmem:[#allocation6 + $0x1d8] sm:$0xff]
    %v211 = vld [vmem:[#allocation6 + $0x1e0] sm:$0xff]
    %v212 = vld [vmem:[#allocation6 + $0x1e8] sm:$0xff]
    %v213 = vld [vmem:[#allocation6 + $0x1f0] sm:$0xff]
    %v214 = vld [vmem:[#allocation6 + $0x1f8] sm:$0xff]
    %v215 = vld [vmem:[#allocation8] sm:$0xf]
    %v217 = vperm.slane %v215, 0
    %v218 = vperm.slane %v215, 1
    %v219 = vperm.slane %v215, 2
    %v220 = vperm.slane %v215, 3
    %v289 = vunpack.c.l.b16 %v151
    %v290 = vunpack.c.h.b16 %v151
    %v291 = vunpack.c.l.b16 %v152
    %v292 = vunpack.c.h.b16 %v152
    %v293 = vunpack.c.l.b16 %v153
    %v294 = vunpack.c.h.b16 %v153
    %v295 = vunpack.c.l.b16 %v154
    %v296 = vunpack.c.h.b16 %v154
    %v297 = vunpack.c.l.b16 %v155
    %v298 = vunpack.c.h.b16 %v155
    %v299 = vunpack.c.l.b16 %v156
    %v300 = vunpack.c.h.b16 %v156
    %v301 = vunpack.c.l.b16 %v157
    %v302 = vunpack.c.h.b16 %v157
    %v303 = vunpack.c.l.b16 %v158
    %v304 = vunpack.c.h.b16 %v158
    %v305 = vunpack.c.l.b16 %v159
    %v306 = vunpack.c.h.b16 %v159
    %v307 = vunpack.c.l.b16 %v160
    %v308 = vunpack.c.h.b16 %v160
    %v309 = vunpack.c.l.b16 %v161
    %v310 = vunpack.c.h.b16 %v161
    %v311 = vunpack.c.l.b16 %v162
    %v312 = vunpack.c.h.b16 %v162
    %v313 = vunpack.c.l.b16 %v163
    %v314 = vunpack.c.h.b16 %v163
    %v315 = vunpack.c.l.b16 %v164
    %v316 = vunpack.c.h.b16 %v164
    %v317 = vunpack.c.l.b16 %v165
    %v318 = vunpack.c.h.b16 %v165
    %v319 = vunpack.c.l.b16 %v166
    %v320 = vunpack.c.h.b16 %v166
    %v321 = vunpack.c.l.b16 %v167
    %v322 = vunpack.c.h.b16 %v167
    %v323 = vunpack.c.l.b16 %v168
    %v324 = vunpack.c.h.b16 %v168
    %v325 = vunpack.c.l.b16 %v169
    %v326 = vunpack.c.h.b16 %v169
    %v327 = vunpack.c.l.b16 %v170
    %v328 = vunpack.c.h.b16 %v170
    %v329 = vunpack.c.l.b16 %v171
    %v330 = vunpack.c.h.b16 %v171
    %v331 = vunpack.c.l.b16 %v172
    %v332 = vunpack.c.h.b16 %v172
    %v333 = vunpack.c.l.b16 %v173
    %v334 = vunpack.c.h.b16 %v173
    %v335 = vunpack.c.l.b16 %v174
    %v336 = vunpack.c.h.b16 %v174
    %v337 = vunpack.c.l.b16 %v175
    %v338 = vunpack.c.h.b16 %v175
    %v339 = vunpack.c.l.b16 %v176
    %v340 = vunpack.c.h.b16 %v176
    %v341 = vunpack.c.l.b16 %v177
    %v342 = vunpack.c.h.b16 %v177
    %v343 = vunpack.c.l.b16 %v178
    %v344 = vunpack.c.h.b16 %v178
    %v345 = vunpack.c.l.b16 %v179
    %v346 = vunpack.c.h.b16 %v179
    %v347 = vunpack.c.l.b16 %v180
    %v348 = vunpack.c.h.b16 %v180
    %v349 = vunpack.c.l.b16 %v181
    %v350 = vunpack.c.h.b16 %v181
    %v351 = vunpack.c.l.b16 %v182
    %v352 = vunpack.c.h.b16 %v182
    %v353 = vunpack.c.l.b16 %v183
    %v354 = vunpack.c.h.b16 %v183
    %v355 = vunpack.c.l.b16 %v184
    %v356 = vunpack.c.h.b16 %v184
    %v357 = vunpack.c.l.b16 %v185
    %v358 = vunpack.c.h.b16 %v185
    %v359 = vunpack.c.l.b16 %v186
    %v360 = vunpack.c.h.b16 %v186
    %v361 = vunpack.c.l.b16 %v187
    %v362 = vunpack.c.h.b16 %v187
    %v363 = vunpack.c.l.b16 %v188
    %v364 = vunpack.c.h.b16 %v188
    %v365 = vunpack.c.l.b16 %v189
    %v366 = vunpack.c.h.b16 %v189
    %v367 = vunpack.c.l.b16 %v190
    %v368 = vunpack.c.h.b16 %v190
    %v369 = vunpack.c.l.b16 %v191
    %v370 = vunpack.c.h.b16 %v191
    %v371 = vunpack.c.l.b16 %v192
    %v372 = vunpack.c.h.b16 %v192
    %v373 = vunpack.c.l.b16 %v193
    %v374 = vunpack.c.h.b16 %v193
    %v375 = vunpack.c.l.b16 %v194
    %v376 = vunpack.c.h.b16 %v194
    %v377 = vunpack.c.l.b16 %v195
    %v378 = vunpack.c.h.b16 %v195
    %v379 = vunpack.c.l.b16 %v196
    %v380 = vunpack.c.h.b16 %v196
    %v381 = vunpack.c.l.b16 %v197
    %v382 = vunpack.c.h.b16 %v197
    %v383 = vunpack.c.l.b16 %v198
    %v384 = vunpack.c.h.b16 %v198
    %v385 = vunpack.c.l.b16 %v199
    %v386 = vunpack.c.h.b16 %v199
    %v387 = vunpack.c.l.b16 %v200
    %v388 = vunpack.c.h.b16 %v200
    %v389 = vunpack.c.l.b16 %v201
    %v390 = vunpack.c.h.b16 %v201
    %v391 = vunpack.c.l.b16 %v202
    %v392 = vunpack.c.h.b16 %v202
    %v393 = vunpack.c.l.b16 %v203
    %v394 = vunpack.c.h.b16 %v203
    %v395 = vunpack.c.l.b16 %v204
    %v396 = vunpack.c.h.b16 %v204
    %v397 = vunpack.c.l.b16 %v205
    %v398 = vunpack.c.h.b16 %v205
    %v399 = vunpack.c.l.b16 %v206
    %v400 = vunpack.c.h.b16 %v206
    %v401 = vunpack.c.l.b16 %v207
    %v402 = vunpack.c.h.b16 %v207
    %v403 = vunpack.c.l.b16 %v208
    %v404 = vunpack.c.h.b16 %v208
    %v405 = vunpack.c.l.b16 %v209
    %v406 = vunpack.c.h.b16 %v209
    %v407 = vunpack.c.l.b16 %v210
    %v408 = vunpack.c.h.b16 %v210
    %v409 = vunpack.c.l.b16 %v211
    %v410 = vunpack.c.h.b16 %v211
    %v411 = vunpack.c.l.b16 %v212
    %v412 = vunpack.c.h.b16 %v212
    %v413 = vunpack.c.l.b16 %v213
    %v414 = vunpack.c.h.b16 %v213
    %v415 = vunpack.c.l.b16 %v214
    %v416 = vunpack.c.h.b16 %v214
    %v417 = vpack.c.b16 %v293, %v289
    %v418 = vpack.c.b16 %v294, %v290
    %v419 = vpack.c.b16 %v295, %v291
    %v420 = vpack.c.b16 %v296, %v292
    %v421 = vpack.c.b16 %v301, %v297
    %v422 = vpack.c.b16 %v302, %v298
    %v423 = vpack.c.b16 %v303, %v299
    %v424 = vpack.c.b16 %v304, %v300
    %v425 = vpack.c.b16 %v309, %v305
    %v426 = vpack.c.b16 %v310, %v306
    %v427 = vpack.c.b16 %v311, %v307
    %v428 = vpack.c.b16 %v312, %v308
    %v429 = vpack.c.b16 %v317, %v313
    %v430 = vpack.c.b16 %v318, %v314
    %v431 = vpack.c.b16 %v319, %v315
    %v432 = vpack.c.b16 %v320, %v316
    %v433 = vpack.c.b16 %v325, %v321
    %v434 = vpack.c.b16 %v326, %v322
    %v435 = vpack.c.b16 %v327, %v323
    %v436 = vpack.c.b16 %v328, %v324
    %v437 = vpack.c.b16 %v333, %v329
    %v438 = vpack.c.b16 %v334, %v330
    %v439 = vpack.c.b16 %v335, %v331
    %v440 = vpack.c.b16 %v336, %v332
    %v441 = vpack.c.b16 %v341, %v337
    %v442 = vpack.c.b16 %v342, %v338
    %v443 = vpack.c.b16 %v343, %v339
    %v444 = vpack.c.b16 %v344, %v340
    %v445 = vpack.c.b16 %v349, %v345
    %v446 = vpack.c.b16 %v350, %v346
    %v447 = vpack.c.b16 %v351, %v347
    %v448 = vpack.c.b16 %v352, %v348
    %v449 = vpack.c.b16 %v357, %v353
    %v450 = vpack.c.b16 %v358, %v354
    %v451 = vpack.c.b16 %v359, %v355
    %v452 = vpack.c.b16 %v360, %v356
    %v453 = vpack.c.b16 %v365, %v361
    %v454 = vpack.c.b16 %v366, %v362
    %v455 = vpack.c.b16 %v367, %v363
    %v456 = vpack.c.b16 %v368, %v364
    %v457 = vpack.c.b16 %v373, %v369
    %v458 = vpack.c.b16 %v374, %v370
    %v459 = vpack.c.b16 %v375, %v371
    %v460 = vpack.c.b16 %v376, %v372
    %v461 = vpack.c.b16 %v381, %v377
    %v462 = vpack.c.b16 %v382, %v378
    %v463 = vpack.c.b16 %v383, %v379
    %v464 = vpack.c.b16 %v384, %v380
    %v465 = vpack.c.b16 %v389, %v385
    %v466 = vpack.c.b16 %v390, %v386
    %v467 = vpack.c.b16 %v391, %v387
    %v468 = vpack.c.b16 %v392, %v388
    %v469 = vpack.c.b16 %v397, %v393
    %v470 = vpack.c.b16 %v398, %v394
    %v471 = vpack.c.b16 %v399, %v395
    %v472 = vpack.c.b16 %v400, %v396
    %v473 = vpack.c.b16 %v405, %v401
    %v474 = vpack.c.b16 %v406, %v402
    %v475 = vpack.c.b16 %v407, %v403
    %v476 = vpack.c.b16 %v408, %v404
    %v477 = vpack.c.b16 %v413, %v409
    %v478 = vpack.c.b16 %v414, %v410
    %v479 = vpack.c.b16 %v415, %v411
    %v480 = vpack.c.b16 %v416, %v412
    %545 = vmatpush.bf16.msra.mxu0 %v445
    %546 = vmatpush.bf16.msra.mxu0 %v441
    %547 = vmatpush.bf16.msra.mxu0 %v437
    %548 = vmatpush.bf16.msra.mxu0 %v433
    %549 = vmatpush.bf16.msra.mxu0 %v429
    %550 = vmatpush.bf16.msra.mxu0 %v425
    %551 = vmatpush.bf16.msra.mxu0 %v421
    %552 = vmatpush.bf16.msra.mxu0 %v417
    %553 = vmatmul.bf16.gmra.mxu0 %v135
    %v554 = vpop.f32.mrf.mxu0
    %v555 = vadd.f32 %v217, %v554
    %v556 = vpop.f32.mrf.mxu0
    %v557 = vadd.f32 %v217, %v556
    %558 = vmatmul.bf16.gmra.mxu0 %v137
    %v559 = vpop.f32.mrf.mxu0
    %v560 = vadd.f32 %v217, %v559
    %v561 = vpop.f32.mrf.mxu0
    %v562 = vadd.f32 %v217, %v561
    %563 = vmatmul.bf16.gmra.mxu0 %v139
    %v564 = vpop.f32.mrf.mxu0
    %v565 = vadd.f32 %v217, %v564
    %v566 = vpop.f32.mrf.mxu0
    %v567 = vadd.f32 %v217, %v566
    %568 = vmatmul.bf16.gmra.mxu0 %v141
    %v569 = vpop.f32.mrf.mxu0
    %v570 = vadd.f32 %v217, %v569
    %v571 = vpop.f32.mrf.mxu0
    %v572 = vadd.f32 %v217, %v571
    %573 = vmatmul.bf16.gmra.mxu0 %v143
    %v574 = vpop.f32.mrf.mxu0
    %v575 = vadd.f32 %v217, %v574
    %v576 = vpop.f32.mrf.mxu0
    %v577 = vadd.f32 %v217, %v576
    %578 = vmatmul.bf16.gmra.mxu0 %v145
    %v579 = vpop.f32.mrf.mxu0
    %v580 = vadd.f32 %v217, %v579
    %v581 = vpop.f32.mrf.mxu0
    %v582 = vadd.f32 %v217, %v581
    %583 = vmatmul.bf16.gmra.mxu0 %v147
    %v584 = vpop.f32.mrf.mxu0
    %v585 = vadd.f32 %v217, %v584
    %v586 = vpop.f32.mrf.mxu0
    %v587 = vadd.f32 %v217, %v586
    %588 = vmatmul.bf16.gmra.mxu0 %v149
    %v589 = vpop.f32.mrf.mxu0
    %v590 = vadd.f32 %v217, %v589
    %v591 = vpop.f32.mrf.mxu0
    %v592 = vadd.f32 %v217, %v591
    %593 = vdwg.mxu0
    %594 = vmatpush.bf16.msra.mxu0 %v477
    %595 = vmatpush.bf16.msra.mxu0 %v473
    %596 = vmatpush.bf16.msra.mxu0 %v469
    %597 = vmatpush.bf16.msra.mxu0 %v465
    %598 = vmatpush.bf16.msra.mxu0 %v461
    %599 = vmatpush.bf16.msra.mxu0 %v457
    %600 = vmatpush.bf16.msra.mxu0 %v453
    %601 = vmatpush.bf16.msra.mxu0 %v449
    %602 = vmatmul.bf16.gmra.mxu0 %v136
    %v603 = vpop.f32.mrf.mxu0
    %v604 = vadd.f32 %v555, %v603
    %v605 = vpop.f32.mrf.mxu0
    %v606 = vadd.f32 %v557, %v605
    %607 = vmatmul.bf16.gmra.mxu0 %v138
    %v608 = vpop.f32.mrf.mxu0
    %v609 = vadd.f32 %v560, %v608
    %v610 = vpop.f32.mrf.mxu0
    %v611 = vadd.f32 %v562, %v610
    %612 = vmatmul.bf16.gmra.mxu0 %v140
    %v613 = vpop.f32.mrf.mxu0
    %v614 = vadd.f32 %v565, %v613
    %v615 = vpop.f32.mrf.mxu0
    %v616 = vadd.f32 %v567, %v615
    %617 = vmatmul.bf16.gmra.mxu0 %v142
    %v618 = vpop.f32.mrf.mxu0
    %v619 = vadd.f32 %v570, %v618
    %v620 = vpop.f32.mrf.mxu0
    %v621 = vadd.f32 %v572, %v620
    %622 = vmatmul.bf16.gmra.mxu0 %v144
    %v623 = vpop.f32.mrf.mxu0
    %v624 = vadd.f32 %v575, %v623
    %v625 = vpop.f32.mrf.mxu0
    %v626 = vadd.f32 %v577, %v625
    %627 = vmatmul.bf16.gmra.mxu0 %v146
    %v628 = vpop.f32.mrf.mxu0
    %v629 = vadd.f32 %v580, %v628
    %v630 = vpop.f32.mrf.mxu0
    %v631 = vadd.f32 %v582, %v630
    %632 = vmatmul.bf16.gmra.mxu0 %v148
    %v633 = vpop.f32.mrf.mxu0
    %v634 = vadd.f32 %v585, %v633
    %v635 = vpop.f32.mrf.mxu0
    %v636 = vadd.f32 %v587, %v635
    %637 = vmatmul.bf16.gmra.mxu0 %v150
    %v638 = vpop.f32.mrf.mxu0
    %v639 = vadd.f32 %v590, %v638
    %v640 = vpop.f32.mrf.mxu0
    %v641 = vadd.f32 %v592, %v640
    %642 = vdwg.mxu0
    %643 = vmatpush.bf16.msra.mxu0 %v446
    %644 = vmatpush.bf16.msra.mxu0 %v442
    %645 = vmatpush.bf16.msra.mxu0 %v438
    %646 = vmatpush.bf16.msra.mxu0 %v434
    %647 = vmatpush.bf16.msra.mxu0 %v430
    %648 = vmatpush.bf16.msra.mxu0 %v426
    %649 = vmatpush.bf16.msra.mxu0 %v422
    %650 = vmatpush.bf16.msra.mxu0 %v418
    %651 = vmatmul.bf16.gmra.mxu0 %v135
    %v652 = vpop.f32.mrf.mxu0
    %v653 = vadd.f32 %v218, %v652
    %v654 = vpop.f32.mrf.mxu0
    %v655 = vadd.f32 %v218, %v654
    %656 = vmatmul.bf16.gmra.mxu0 %v137
    %v657 = vpop.f32.mrf.mxu0
    %v658 = vadd.f32 %v218, %v657
    %v659 = vpop.f32.mrf.mxu0
    %v660 = vadd.f32 %v218, %v659
    %661 = vmatmul.bf16.gmra.mxu0 %v139
    %v662 = vpop.f32.mrf.mxu0
    %v663 = vadd.f32 %v218, %v662
    %v664 = vpop.f32.mrf.mxu0
    %v665 = vadd.f32 %v218, %v664
    %666 = vmatmul.bf16.gmra.mxu0 %v141
    %v667 = vpop.f32.mrf.mxu0
    %v668 = vadd.f32 %v218, %v667
    %v669 = vpop.f32.mrf.mxu0
    %v670 = vadd.f32 %v218, %v669
    %671 = vmatmul.bf16.gmra.mxu0 %v143
    %v672 = vpop.f32.mrf.mxu0
    %v673 = vadd.f32 %v218, %v672
    %v674 = vpop.f32.mrf.mxu0
    %v675 = vadd.f32 %v218, %v674
    %676 = vmatmul.bf16.gmra.mxu0 %v145
    %v677 = vpop.f32.mrf.mxu0
    %v678 = vadd.f32 %v218, %v677
    %v679 = vpop.f32.mrf.mxu0
    %v680 = vadd.f32 %v218, %v679
    %681 = vmatmul.bf16.gmra.mxu0 %v147
    %v682 = vpop.f32.mrf.mxu0
    %v683 = vadd.f32 %v218, %v682
    %v684 = vpop.f32.mrf.mxu0
    %v685 = vadd.f32 %v218, %v684
    %686 = vmatmul.bf16.gmra.mxu0 %v149
    %v687 = vpop.f32.mrf.mxu0
    %v688 = vadd.f32 %v218, %v687
    %v689 = vpop.f32.mrf.mxu0
    %v690 = vadd.f32 %v218, %v689
    %691 = vdwg.mxu0
    %692 = vmatpush.bf16.msra.mxu0 %v478
    %693 = vmatpush.bf16.msra.mxu0 %v474
    %694 = vmatpush.bf16.msra.mxu0 %v470
    %695 = vmatpush.bf16.msra.mxu0 %v466
    %696 = vmatpush.bf16.msra.mxu0 %v462
    %697 = vmatpush.bf16.msra.mxu0 %v458
    %698 = vmatpush.bf16.msra.mxu0 %v454
    %699 = vmatpush.bf16.msra.mxu0 %v450
    %700 = vmatmul.bf16.gmra.mxu0 %v136
    %v701 = vpop.f32.mrf.mxu0
    %v702 = vadd.f32 %v653, %v701
    %v703 = vpop.f32.mrf.mxu0
    %v704 = vadd.f32 %v655, %v703
    %705 = vmatmul.bf16.gmra.mxu0 %v138
    %v706 = vpop.f32.mrf.mxu0
    %v707 = vadd.f32 %v658, %v706
    %v708 = vpop.f32.mrf.mxu0
    %v709 = vadd.f32 %v660, %v708
    %710 = vmatmul.bf16.gmra.mxu0 %v140
    %v711 = vpop.f32.mrf.mxu0
    %v712 = vadd.f32 %v663, %v711
    %v713 = vpop.f32.mrf.mxu0
    %v714 = vadd.f32 %v665, %v713
    %715 = vmatmul.bf16.gmra.mxu0 %v142
    %v716 = vpop.f32.mrf.mxu0
    %v717 = vadd.f32 %v668, %v716
    %v718 = vpop.f32.mrf.mxu0
    %v719 = vadd.f32 %v670, %v718
    %720 = vmatmul.bf16.gmra.mxu0 %v144
    %v721 = vpop.f32.mrf.mxu0
    %v722 = vadd.f32 %v673, %v721
    %v723 = vpop.f32.mrf.mxu0
    %v724 = vadd.f32 %v675, %v723
    %725 = vmatmul.bf16.gmra.mxu0 %v146
    %v726 = vpop.f32.mrf.mxu0
    %v727 = vadd.f32 %v678, %v726
    %v728 = vpop.f32.mrf.mxu0
    %v729 = vadd.f32 %v680, %v728
    %730 = vmatmul.bf16.gmra.mxu0 %v148
    %v731 = vpop.f32.mrf.mxu0
    %v732 = vadd.f32 %v683, %v731
    %v733 = vpop.f32.mrf.mxu0
    %v734 = vadd.f32 %v685, %v733
    %735 = vmatmul.bf16.gmra.mxu0 %v150
    %v736 = vpop.f32.mrf.mxu0
    %v737 = vadd.f32 %v688, %v736
    %v738 = vpop.f32.mrf.mxu0
    %v739 = vadd.f32 %v690, %v738
    %740 = vdwg.mxu0
    %741 = vmatpush.bf16.msra.mxu0 %v447
    %742 = vmatpush.bf16.msra.mxu0 %v443
    %743 = vmatpush.bf16.msra.mxu0 %v439
    %744 = vmatpush.bf16.msra.mxu0 %v435
    %745 = vmatpush.bf16.msra.mxu0 %v431
    %746 = vmatpush.bf16.msra.mxu0 %v427
    %747 = vmatpush.bf16.msra.mxu0 %v423
    %748 = vmatpush.bf16.msra.mxu0 %v419
    %749 = vmatmul.bf16.gmra.mxu0 %v135
    %v750 = vpop.f32.mrf.mxu0
    %v751 = vadd.f32 %v219, %v750
    %v752 = vpop.f32.mrf.mxu0
    %v753 = vadd.f32 %v219, %v752
    %754 = vmatmul.bf16.gmra.mxu0 %v137
    %v755 = vpop.f32.mrf.mxu0
    %v756 = vadd.f32 %v219, %v755
    %v757 = vpop.f32.mrf.mxu0
    %v758 = vadd.f32 %v219, %v757
    %759 = vmatmul.bf16.gmra.mxu0 %v139
    %v760 = vpop.f32.mrf.mxu0
    %v761 = vadd.f32 %v219, %v760
    %v762 = vpop.f32.mrf.mxu0
    %v763 = vadd.f32 %v219, %v762
    %764 = vmatmul.bf16.gmra.mxu0 %v141
    %v765 = vpop.f32.mrf.mxu0
    %v766 = vadd.f32 %v219, %v765
    %v767 = vpop.f32.mrf.mxu0
    %v768 = vadd.f32 %v219, %v767
    %769 = vmatmul.bf16.gmra.mxu0 %v143
    %v770 = vpop.f32.mrf.mxu0
    %v771 = vadd.f32 %v219, %v770
    %v772 = vpop.f32.mrf.mxu0
    %v773 = vadd.f32 %v219, %v772
    %774 = vmatmul.bf16.gmra.mxu0 %v145
    %v775 = vpop.f32.mrf.mxu0
    %v776 = vadd.f32 %v219, %v775
    %v777 = vpop.f32.mrf.mxu0
    %v778 = vadd.f32 %v219, %v777
    %779 = vmatmul.bf16.gmra.mxu0 %v147
    %v780 = vpop.f32.mrf.mxu0
    %v781 = vadd.f32 %v219, %v780
    %v782 = vpop.f32.mrf.mxu0
    %v783 = vadd.f32 %v219, %v782
    %784 = vmatmul.bf16.gmra.mxu0 %v149
    %v785 = vpop.f32.mrf.mxu0
    %v786 = vadd.f32 %v219, %v785
    %v787 = vpop.f32.mrf.mxu0
    %v788 = vadd.f32 %v219, %v787
    %789 = vdwg.mxu0
    %790 = vmatpush.bf16.msra.mxu0 %v479
    %791 = vmatpush.bf16.msra.mxu0 %v475
    %792 = vmatpush.bf16.msra.mxu0 %v471
    %793 = vmatpush.bf16.msra.mxu0 %v467
    %794 = vmatpush.bf16.msra.mxu0 %v463
    %795 = vmatpush.bf16.msra.mxu0 %v459
    %796 = vmatpush.bf16.msra.mxu0 %v455
    %797 = vmatpush.bf16.msra.mxu0 %v451
    %798 = vmatmul.bf16.gmra.mxu0 %v136
    %v799 = vpop.f32.mrf.mxu0
    %v800 = vadd.f32 %v751, %v799
    %v801 = vpop.f32.mrf.mxu0
    %v802 = vadd.f32 %v753, %v801
    %803 = vmatmul.bf16.gmra.mxu0 %v138
    %v804 = vpop.f32.mrf.mxu0
    %v805 = vadd.f32 %v756, %v804
    %v806 = vpop.f32.mrf.mxu0
    %v807 = vadd.f32 %v758, %v806
    %808 = vmatmul.bf16.gmra.mxu0 %v140
    %v809 = vpop.f32.mrf.mxu0
    %v810 = vadd.f32 %v761, %v809
    %v811 = vpop.f32.mrf.mxu0
    %v812 = vadd.f32 %v763, %v811
    %813 = vmatmul.bf16.gmra.mxu0 %v142
    %v814 = vpop.f32.mrf.mxu0
    %v815 = vadd.f32 %v766, %v814
    %v816 = vpop.f32.mrf.mxu0
    %v817 = vadd.f32 %v768, %v816
    %818 = vmatmul.bf16.gmra.mxu0 %v144
    %v819 = vpop.f32.mrf.mxu0
    %v820 = vadd.f32 %v771, %v819
    %v821 = vpop.f32.mrf.mxu0
    %v822 = vadd.f32 %v773, %v821
    %823 = vmatmul.bf16.gmra.mxu0 %v146
    %v824 = vpop.f32.mrf.mxu0
    %v825 = vadd.f32 %v776, %v824
    %v826 = vpop.f32.mrf.mxu0
    %v827 = vadd.f32 %v778, %v826
    %828 = vmatmul.bf16.gmra.mxu0 %v148
    %v829 = vpop.f32.mrf.mxu0
    %v830 = vadd.f32 %v781, %v829
    %v831 = vpop.f32.mrf.mxu0
    %v832 = vadd.f32 %v783, %v831
    %833 = vmatmul.bf16.gmra.mxu0 %v150
    %v834 = vpop.f32.mrf.mxu0
    %v835 = vadd.f32 %v786, %v834
    %v836 = vpop.f32.mrf.mxu0
    %v837 = vadd.f32 %v788, %v836
    %838 = vdwg.mxu0
    %839 = vmatpush.bf16.msra.mxu0 %v448
    %840 = vmatpush.bf16.msra.mxu0 %v444
    %841 = vmatpush.bf16.msra.mxu0 %v440
    %842 = vmatpush.bf16.msra.mxu0 %v436
    %843 = vmatpush.bf16.msra.mxu0 %v432
    %844 = vmatpush.bf16.msra.mxu0 %v428
    %845 = vmatpush.bf16.msra.mxu0 %v424
    %846 = vmatpush.bf16.msra.mxu0 %v420
    %847 = vmatmul.bf16.gmra.mxu0 %v135
    %v848 = vpop.f32.mrf.mxu0
    %v849 = vadd.f32 %v220, %v848
    %v850 = vpop.f32.mrf.mxu0
    %v851 = vadd.f32 %v220, %v850
    %852 = vmatmul.bf16.gmra.mxu0 %v137
    %v853 = vpop.f32.mrf.mxu0
    %v854 = vadd.f32 %v220, %v853
    %v855 = vpop.f32.mrf.mxu0
    %v856 = vadd.f32 %v220, %v855
    %857 = vmatmul.bf16.gmra.mxu0 %v139
    %v858 = vpop.f32.mrf.mxu0
    %v859 = vadd.f32 %v220, %v858
    %v860 = vpop.f32.mrf.mxu0
    %v861 = vadd.f32 %v220, %v860
    %862 = vmatmul.bf16.gmra.mxu0 %v141
    %v863 = vpop.f32.mrf.mxu0
    %v864 = vadd.f32 %v220, %v863
    %v865 = vpop.f32.mrf.mxu0
    %v866 = vadd.f32 %v220, %v865
    %867 = vmatmul.bf16.gmra.mxu0 %v143
    %v868 = vpop.f32.mrf.mxu0
    %v869 = vadd.f32 %v220, %v868
    %v870 = vpop.f32.mrf.mxu0
    %v871 = vadd.f32 %v220, %v870
    %872 = vmatmul.bf16.gmra.mxu0 %v145
    %v873 = vpop.f32.mrf.mxu0
    %v874 = vadd.f32 %v220, %v873
    %v875 = vpop.f32.mrf.mxu0
    %v876 = vadd.f32 %v220, %v875
    %877 = vmatmul.bf16.gmra.mxu0 %v147
    %v878 = vpop.f32.mrf.mxu0
    %v879 = vadd.f32 %v220, %v878
    %v880 = vpop.f32.mrf.mxu0
    %v881 = vadd.f32 %v220, %v880
    %882 = vmatmul.bf16.gmra.mxu0 %v149
    %v883 = vpop.f32.mrf.mxu0
    %v884 = vadd.f32 %v220, %v883
    %v885 = vpop.f32.mrf.mxu0
    %v886 = vadd.f32 %v220, %v885
    %887 = vdwg.mxu0
    %888 = vmatpush.bf16.msra.mxu0 %v480
    %889 = vmatpush.bf16.msra.mxu0 %v476
    %890 = vmatpush.bf16.msra.mxu0 %v472
    %891 = vmatpush.bf16.msra.mxu0 %v468
    %892 = vmatpush.bf16.msra.mxu0 %v464
    %893 = vmatpush.bf16.msra.mxu0 %v460
    %894 = vmatpush.bf16.msra.mxu0 %v456
    %895 = vmatpush.bf16.msra.mxu0 %v452
    %896 = vmatmul.bf16.gmra.mxu0 %v136
    %v897 = vpop.f32.mrf.mxu0
    %v898 = vadd.f32 %v849, %v897
    %v899 = vpop.f32.mrf.mxu0
    %v900 = vadd.f32 %v851, %v899
    %901 = vmatmul.bf16.gmra.mxu0 %v138
    %v902 = vpop.f32.mrf.mxu0
    %v903 = vadd.f32 %v854, %v902
    %v904 = vpop.f32.mrf.mxu0
    %v905 = vadd.f32 %v856, %v904
    %906 = vmatmul.bf16.gmra.mxu0 %v140
    %v907 = vpop.f32.mrf.mxu0
    %v908 = vadd.f32 %v859, %v907
    %v909 = vpop.f32.mrf.mxu0
    %v910 = vadd.f32 %v861, %v909
    %911 = vmatmul.bf16.gmra.mxu0 %v142
    %v912 = vpop.f32.mrf.mxu0
    %v913 = vadd.f32 %v864, %v912
    %v914 = vpop.f32.mrf.mxu0
    %v915 = vadd.f32 %v866, %v914
    %916 = vmatmul.bf16.gmra.mxu0 %v144
    %v917 = vpop.f32.mrf.mxu0
    %v918 = vadd.f32 %v869, %v917
    %v919 = vpop.f32.mrf.mxu0
    %v920 = vadd.f32 %v871, %v919
    %921 = vmatmul.bf16.gmra.mxu0 %v146
    %v922 = vpop.f32.mrf.mxu0
    %v923 = vadd.f32 %v874, %v922
    %v924 = vpop.f32.mrf.mxu0
    %v925 = vadd.f32 %v876, %v924
    %926 = vmatmul.bf16.gmra.mxu0 %v148
    %v927 = vpop.f32.mrf.mxu0
    %v928 = vadd.f32 %v879, %v927
    %v929 = vpop.f32.mrf.mxu0
    %v930 = vadd.f32 %v881, %v929
    %931 = vmatmul.bf16.gmra.mxu0 %v150
    %v932 = vpop.f32.mrf.mxu0
    %v933 = vadd.f32 %v884, %v932
    %v934 = vpop.f32.mrf.mxu0
    %v935 = vadd.f32 %v886, %v934
    %936 = vdwg.mxu0
    %v937 = vmul.f32 %v604, 0.2
    %v938 = vmul.f32 %v702, 0.2
    %v939 = vmul.f32 %v800, 0.2
    %v940 = vmul.f32 %v898, 0.2
    %v941 = vmul.f32 %v606, 0.2
    %v942 = vmul.f32 %v704, 0.2
    %v943 = vmul.f32 %v802, 0.2
    %v944 = vmul.f32 %v900, 0.2
    %v945 = vmul.f32 %v609, 0.2
    %v946 = vmul.f32 %v707, 0.2
    %v947 = vmul.f32 %v805, 0.2
    %v948 = vmul.f32 %v903, 0.2
    %v949 = vmul.f32 %v611, 0.2
    %v950 = vmul.f32 %v709, 0.2
    %v951 = vmul.f32 %v807, 0.2
    %v952 = vmul.f32 %v905, 0.2
    %v953 = vmul.f32 %v614, 0.2
    %v954 = vmul.f32 %v712, 0.2
    %v955 = vmul.f32 %v810, 0.2
    %v956 = vmul.f32 %v908, 0.2
    %v957 = vmul.f32 %v616, 0.2
    %v958 = vmul.f32 %v714, 0.2
    %v959 = vmul.f32 %v812, 0.2
    %v960 = vmul.f32 %v910, 0.2
    %v961 = vmul.f32 %v619, 0.2
    %v962 = vmul.f32 %v717, 0.2
    %v963 = vmul.f32 %v815, 0.2
    %v964 = vmul.f32 %v913, 0.2
    %v965 = vmul.f32 %v621, 0.2
    %v966 = vmul.f32 %v719, 0.2
    %v967 = vmul.f32 %v817, 0.2
    %v968 = vmul.f32 %v915, 0.2
    %v969 = vmul.f32 %v624, 0.2
    %v970 = vmul.f32 %v722, 0.2
    %v971 = vmul.f32 %v820, 0.2
    %v972 = vmul.f32 %v918, 0.2
    %v973 = vmul.f32 %v626, 0.2
    %v974 = vmul.f32 %v724, 0.2
    %v975 = vmul.f32 %v822, 0.2
    %v976 = vmul.f32 %v920, 0.2
    %v977 = vmul.f32 %v629, 0.2
    %v978 = vmul.f32 %v727, 0.2
    %v979 = vmul.f32 %v825, 0.2
    %v980 = vmul.f32 %v923, 0.2
    %v981 = vmul.f32 %v631, 0.2
    %v982 = vmul.f32 %v729, 0.2
    %v983 = vmul.f32 %v827, 0.2
    %v984 = vmul.f32 %v925, 0.2
    %v985 = vmul.f32 %v634, 0.2
    %v986 = vmul.f32 %v732, 0.2
    %v987 = vmul.f32 %v830, 0.2
    %v988 = vmul.f32 %v928, 0.2
    %v989 = vmul.f32 %v636, 0.2
    %v990 = vmul.f32 %v734, 0.2
    %v991 = vmul.f32 %v832, 0.2
    %v992 = vmul.f32 %v930, 0.2
    %v993 = vmul.f32 %v639, 0.2
    %v994 = vmul.f32 %v737, 0.2
    %v995 = vmul.f32 %v835, 0.2
    %v996 = vmul.f32 %v933, 0.2
    %v997 = vmul.f32 %v641, 0.2
    %v998 = vmul.f32 %v739, 0.2
    %v999 = vmul.f32 %v837, 0.2
    %v1000 = vmul.f32 %v935, 0.2
    %v1001 = vmax.f32 %v604, %v937
    %v1002 = vmax.f32 %v702, %v938
    %v1003 = vmax.f32 %v800, %v939
    %v1004 = vmax.f32 %v898, %v940
    %v1005 = vmax.f32 %v606, %v941
    %v1006 = vmax.f32 %v704, %v942
    %v1007 = vmax.f32 %v802, %v943
    %v1008 = vmax.f32 %v900, %v944
    %v1009 = vmax.f32 %v609, %v945
    %v1010 = vmax.f32 %v707, %v946
    %v1011 = vmax.f32 %v805, %v947
    %v1012 = vmax.f32 %v903, %v948
    %v1013 = vmax.f32 %v611, %v949
    %v1014 = vmax.f32 %v709, %v950
    %v1015 = vmax.f32 %v807, %v951
    %v1016 = vmax.f32 %v905, %v952
    %v1017 = vmax.f32 %v614, %v953
    %v1018 = vmax.f32 %v712, %v954
    %v1019 = vmax.f32 %v810, %v955
    %v1020 = vmax.f32 %v908, %v956
    %v1021 = vmax.f32 %v616, %v957
    %v1022 = vmax.f32 %v714, %v958
    %v1023 = vmax.f32 %v812, %v959
    %v1024 = vmax.f32 %v910, %v960
    %v1025 = vmax.f32 %v619, %v961
    %v1026 = vmax.f32 %v717, %v962
    %v1027 = vmax.f32 %v815, %v963
    %v1028 = vmax.f32 %v913, %v964
    %v1029 = vmax.f32 %v621, %v965
    %v1030 = vmax.f32 %v719, %v966
    %v1031 = vmax.f32 %v817, %v967
    %v1032 = vmax.f32 %v915, %v968
    %v1033 = vmax.f32 %v624, %v969
    %v1034 = vmax.f32 %v722, %v970
    %v1035 = vmax.f32 %v820, %v971
    %v1036 = vmax.f32 %v918, %v972
    %v1037 = vmax.f32 %v626, %v973
    %v1038 = vmax.f32 %v724, %v974
    %v1039 = vmax.f32 %v822, %v975
    %v1040 = vmax.f32 %v920, %v976
    %v1041 = vmax.f32 %v629, %v977
    %v1042 = vmax.f32 %v727, %v978
    %v1043 = vmax.f32 %v825, %v979
    %v1044 = vmax.f32 %v923, %v980
    %v1045 = vmax.f32 %v631, %v981
    %v1046 = vmax.f32 %v729, %v982
    %v1047 = vmax.f32 %v827, %v983
    %v1048 = vmax.f32 %v925, %v984
    %v1049 = vmax.f32 %v634, %v985
    %v1050 = vmax.f32 %v732, %v986
    %v1051 = vmax.f32 %v830, %v987
    %v1052 = vmax.f32 %v928, %v988
    %v1053 = vmax.f32 %v636, %v989
    %v1054 = vmax.f32 %v734, %v990
    %v1055 = vmax.f32 %v832, %v991
    %v1056 = vmax.f32 %v930, %v992
    %v1057 = vmax.f32 %v639, %v993
    %v1058 = vmax.f32 %v737, %v994
    %v1059 = vmax.f32 %v835, %v995
    %v1060 = vmax.f32 %v933, %v996
    %v1061 = vmax.f32 %v641, %v997
    %v1062 = vmax.f32 %v739, %v998
    %v1063 = vmax.f32 %v837, %v999
    %v1064 = vmax.f32 %v935, %v1000
    %v1065 = vpack.c.bf16 %v1005, %v1001
    %v1066 = vpack.c.bf16 %v1006, %v1002
    %v1067 = vpack.c.bf16 %v1007, %v1003
    %v1068 = vpack.c.bf16 %v1008, %v1004
    %v1069 = vpack.c.bf16 %v1013, %v1009
    %v1070 = vpack.c.bf16 %v1014, %v1010
    %v1071 = vpack.c.bf16 %v1015, %v1011
    %v1072 = vpack.c.bf16 %v1016, %v1012
    %v1073 = vpack.c.bf16 %v1021, %v1017
    %v1074 = vpack.c.bf16 %v1022, %v1018
    %v1075 = vpack.c.bf16 %v1023, %v1019
    %v1076 = vpack.c.bf16 %v1024, %v1020
    %v1077 = vpack.c.bf16 %v1029, %v1025
    %v1078 = vpack.c.bf16 %v1030, %v1026
    %v1079 = vpack.c.bf16 %v1031, %v1027
    %v1080 = vpack.c.bf16 %v1032, %v1028
    %v1081 = vpack.c.bf16 %v1037, %v1033
    %v1082 = vpack.c.bf16 %v1038, %v1034
    %v1083 = vpack.c.bf16 %v1039, %v1035
    %v1084 = vpack.c.bf16 %v1040, %v1036
    %v1085 = vpack.c.bf16 %v1045, %v1041
    %v1086 = vpack.c.bf16 %v1046, %v1042
    %v1087 = vpack.c.bf16 %v1047, %v1043
    %v1088 = vpack.c.bf16 %v1048, %v1044
    %v1089 = vpack.c.bf16 %v1053, %v1049
    %v1090 = vpack.c.bf16 %v1054, %v1050
    %v1091 = vpack.c.bf16 %v1055, %v1051
    %v1092 = vpack.c.bf16 %v1056, %v1052
    %v1093 = vpack.c.bf16 %v1061, %v1057
    %v1094 = vpack.c.bf16 %v1062, %v1058
    %v1095 = vpack.c.bf16 %v1063, %v1059
    %v1096 = vpack.c.bf16 %v1064, %v1060
    %v1097 = vld [vmem:[#allocation9] sm:$0xff]
    %v1098 = vld [vmem:[#allocation9 + $0x8] sm:$0xff]
    %v1099 = vld [vmem:[#allocation9 + $0x10] sm:$0xff]
    %v1100 = vld [vmem:[#allocation9 + $0x18] sm:$0xff]
    %v1101 = vld [vmem:[#allocation9 + $0x20] sm:$0xff]
    %v1102 = vld [vmem:[#allocation9 + $0x28] sm:$0xff]
    %v1103 = vld [vmem:[#allocation9 + $0x30] sm:$0xff]
    %v1104 = vld [vmem:[#allocation9 + $0x38] sm:$0xff]
    %v1105 = vld [vmem:[#allocation9 + $0x40] sm:$0xff]
    %v1106 = vld [vmem:[#allocation9 + $0x48] sm:$0xff]
    %v1107 = vld [vmem:[#allocation9 + $0x50] sm:$0xff]
    %v1108 = vld [vmem:[#allocation9 + $0x58] sm:$0xff]
    %v1109 = vld [vmem:[#allocation9 + $0x60] sm:$0xff]
    %v1110 = vld [vmem:[#allocation9 + $0x68] sm:$0xff]
    %v1111 = vld [vmem:[#allocation9 + $0x70] sm:$0xff]
    %v1112 = vld [vmem:[#allocation9 + $0x78] sm:$0xff]
    %v1113 = vld [vmem:[#allocation9 + $0x80] sm:$0xff]
    %v1114 = vld [vmem:[#allocation9 + $0x88] sm:$0xff]
    %v1115 = vld [vmem:[#allocation9 + $0x90] sm:$0xff]
    %v1116 = vld [vmem:[#allocation9 + $0x98] sm:$0xff]
    %v1117 = vld [vmem:[#allocation9 + $0xa0] sm:$0xff]
    %v1118 = vld [vmem:[#allocation9 + $0xa8] sm:$0xff]
    %v1119 = vld [vmem:[#allocation9 + $0xb0] sm:$0xff]
    %v1120 = vld [vmem:[#allocation9 + $0xb8] sm:$0xff]
    %v1121 = vld [vmem:[#allocation9 + $0xc0] sm:$0xff]
    %v1122 = vld [vmem:[#allocation9 + $0xc8] sm:$0xff]
    %v1123 = vld [vmem:[#allocation9 + $0xd0] sm:$0xff]
    %v1124 = vld [vmem:[#allocation9 + $0xd8] sm:$0xff]
    %v1125 = vld [vmem:[#allocation9 + $0xe0] sm:$0xff]
    %v1126 = vld [vmem:[#allocation9 + $0xe8] sm:$0xff]
    %v1127 = vld [vmem:[#allocation9 + $0xf0] sm:$0xff]
    %v1128 = vld [vmem:[#allocation9 + $0xf8] sm:$0xff]
    %v1129 = vld [vmem:[#allocation9 + $0x100] sm:$0xff]
    %v1130 = vld [vmem:[#allocation9 + $0x108] sm:$0xff]
    %v1131 = vld [vmem:[#allocation9 + $0x110] sm:$0xff]
    %v1132 = vld [vmem:[#allocation9 + $0x118] sm:$0xff]
    %v1133 = vld [vmem:[#allocation9 + $0x120] sm:$0xff]
    %v1134 = vld [vmem:[#allocation9 + $0x128] sm:$0xff]
    %v1135 = vld [vmem:[#allocation9 + $0x130] sm:$0xff]
    %v1136 = vld [vmem:[#allocation9 + $0x138] sm:$0xff]
    %v1137 = vld [vmem:[#allocation9 + $0x140] sm:$0xff]
    %v1138 = vld [vmem:[#allocation9 + $0x148] sm:$0xff]
    %v1139 = vld [vmem:[#allocation9 + $0x150] sm:$0xff]
    %v1140 = vld [vmem:[#allocation9 + $0x158] sm:$0xff]
    %v1141 = vld [vmem:[#allocation9 + $0x160] sm:$0xff]
    %v1142 = vld [vmem:[#allocation9 + $0x168] sm:$0xff]
    %v1143 = vld [vmem:[#allocation9 + $0x170] sm:$0xff]
    %v1144 = vld [vmem:[#allocation9 + $0x178] sm:$0xff]
    %v1145 = vld [vmem:[#allocation9 + $0x180] sm:$0xff]
    %v1146 = vld [vmem:[#allocation9 + $0x188] sm:$0xff]
    %v1147 = vld [vmem:[#allocation9 + $0x190] sm:$0xff]
    %v1148 = vld [vmem:[#allocation9 + $0x198] sm:$0xff]
    %v1149 = vld [vmem:[#allocation9 + $0x1a0] sm:$0xff]
    %v1150 = vld [vmem:[#allocation9 + $0x1a8] sm:$0xff]
    %v1151 = vld [vmem:[#allocation9 + $0x1b0] sm:$0xff]
    %v1152 = vld [vmem:[#allocation9 + $0x1b8] sm:$0xff]
    %v1153 = vld [vmem:[#allocation9 + $0x1c0] sm:$0xff]
    %v1154 = vld [vmem:[#allocation9 + $0x1c8] sm:$0xff]
    %v1155 = vld [vmem:[#allocation9 + $0x1d0] sm:$0xff]
    %v1156 = vld [vmem:[#allocation9 + $0x1d8] sm:$0xff]
    %v1157 = vld [vmem:[#allocation9 + $0x1e0] sm:$0xff]
    %v1158 = vld [vmem:[#allocation9 + $0x1e8] sm:$0xff]
    %v1159 = vld [vmem:[#allocation9 + $0x1f0] sm:$0xff]
    %v1160 = vld [vmem:[#allocation9 + $0x1f8] sm:$0xff]
    %v1161 = vld [vmem:[%s4] sm:$0x3]
    %v1163 = vperm.slane %v1161, 0
    %v1164 = vperm.slane %v1161, 1
    %v1231 = vunpack.c.l.b16 %v1097
    %v1232 = vunpack.c.h.b16 %v1097
    %v1233 = vunpack.c.l.b16 %v1098
    %v1234 = vunpack.c.h.b16 %v1098
    %v1235 = vunpack.c.l.b16 %v1099
    %v1236 = vunpack.c.h.b16 %v1099
    %v1237 = vunpack.c.l.b16 %v1100
    %v1238 = vunpack.c.h.b16 %v1100
    %v1239 = vunpack.c.l.b16 %v1101
    %v1240 = vunpack.c.h.b16 %v1101
    %v1241 = vunpack.c.l.b16 %v1102
    %v1242 = vunpack.c.h.b16 %v1102
    %v1243 = vunpack.c.l.b16 %v1103
    %v1244 = vunpack.c.h.b16 %v1103
    %v1245 = vunpack.c.l.b16 %v1104
    %v1246 = vunpack.c.h.b16 %v1104
    %v1247 = vunpack.c.l.b16 %v1105
    %v1248 = vunpack.c.h.b16 %v1105
    %v1249 = vunpack.c.l.b16 %v1106
    %v1250 = vunpack.c.h.b16 %v1106
    %v1251 = vunpack.c.l.b16 %v1107
    %v1252 = vunpack.c.h.b16 %v1107
    %v1253 = vunpack.c.l.b16 %v1108
    %v1254 = vunpack.c.h.b16 %v1108
    %v1255 = vunpack.c.l.b16 %v1109
    %v1256 = vunpack.c.h.b16 %v1109
    %v1257 = vunpack.c.l.b16 %v1110
    %v1258 = vunpack.c.h.b16 %v1110
    %v1259 = vunpack.c.l.b16 %v1111
    %v1260 = vunpack.c.h.b16 %v1111
    %v1261 = vunpack.c.l.b16 %v1112
    %v1262 = vunpack.c.h.b16 %v1112
    %v1263 = vunpack.c.l.b16 %v1113
    %v1264 = vunpack.c.h.b16 %v1113
    %v1265 = vunpack.c.l.b16 %v1114
    %v1266 = vunpack.c.h.b16 %v1114
    %v1267 = vunpack.c.l.b16 %v1115
    %v1268 = vunpack.c.h.b16 %v1115
    %v1269 = vunpack.c.l.b16 %v1116
    %v1270 = vunpack.c.h.b16 %v1116
    %v1271 = vunpack.c.l.b16 %v1117
    %v1272 = vunpack.c.h.b16 %v1117
    %v1273 = vunpack.c.l.b16 %v1118
    %v1274 = vunpack.c.h.b16 %v1118
    %v1275 = vunpack.c.l.b16 %v1119
    %v1276 = vunpack.c.h.b16 %v1119
    %v1277 = vunpack.c.l.b16 %v1120
    %v1278 = vunpack.c.h.b16 %v1120
    %v1279 = vunpack.c.l.b16 %v1121
    %v1280 = vunpack.c.h.b16 %v1121
    %v1281 = vunpack.c.l.b16 %v1122
    %v1282 = vunpack.c.h.b16 %v1122
    %v1283 = vunpack.c.l.b16 %v1123
    %v1284 = vunpack.c.h.b16 %v1123
    %v1285 = vunpack.c.l.b16 %v1124
    %v1286 = vunpack.c.h.b16 %v1124
    %v1287 = vunpack.c.l.b16 %v1125
    %v1288 = vunpack.c.h.b16 %v1125
    %v1289 = vunpack.c.l.b16 %v1126
    %v1290 = vunpack.c.h.b16 %v1126
    %v1291 = vunpack.c.l.b16 %v1127
    %v1292 = vunpack.c.h.b16 %v1127
    %v1293 = vunpack.c.l.b16 %v1128
    %v1294 = vunpack.c.h.b16 %v1128
    %v1295 = vunpack.c.l.b16 %v1129
    %v1296 = vunpack.c.h.b16 %v1129
    %v1297 = vunpack.c.l.b16 %v1130
    %v1298 = vunpack.c.h.b16 %v1130
    %v1299 = vunpack.c.l.b16 %v1131
    %v1300 = vunpack.c.h.b16 %v1131
    %v1301 = vunpack.c.l.b16 %v1132
    %v1302 = vunpack.c.h.b16 %v1132
    %v1303 = vunpack.c.l.b16 %v1133
    %v1304 = vunpack.c.h.b16 %v1133
    %v1305 = vunpack.c.l.b16 %v1134
    %v1306 = vunpack.c.h.b16 %v1134
    %v1307 = vunpack.c.l.b16 %v1135
    %v1308 = vunpack.c.h.b16 %v1135
    %v1309 = vunpack.c.l.b16 %v1136
    %v1310 = vunpack.c.h.b16 %v1136
    %v1311 = vunpack.c.l.b16 %v1137
    %v1312 = vunpack.c.h.b16 %v1137
    %v1313 = vunpack.c.l.b16 %v1138
    %v1314 = vunpack.c.h.b16 %v1138
    %v1315 = vunpack.c.l.b16 %v1139
    %v1316 = vunpack.c.h.b16 %v1139
    %v1317 = vunpack.c.l.b16 %v1140
    %v1318 = vunpack.c.h.b16 %v1140
    %v1319 = vunpack.c.l.b16 %v1141
    %v1320 = vunpack.c.h.b16 %v1141
    %v1321 = vunpack.c.l.b16 %v1142
    %v1322 = vunpack.c.h.b16 %v1142
    %v1323 = vunpack.c.l.b16 %v1143
    %v1324 = vunpack.c.h.b16 %v1143
    %v1325 = vunpack.c.l.b16 %v1144
    %v1326 = vunpack.c.h.b16 %v1144
    %v1327 = vunpack.c.l.b16 %v1145
    %v1328 = vunpack.c.h.b16 %v1145
    %v1329 = vunpack.c.l.b16 %v1146
    %v1330 = vunpack.c.h.b16 %v1146
    %v1331 = vunpack.c.l.b16 %v1147
    %v1332 = vunpack.c.h.b16 %v1147
    %v1333 = vunpack.c.l.b16 %v1148
    %v1334 = vunpack.c.h.b16 %v1148
    %v1335 = vunpack.c.l.b16 %v1149
    %v1336 = vunpack.c.h.b16 %v1149
    %v1337 = vunpack.c.l.b16 %v1150
    %v1338 = vunpack.c.h.b16 %v1150
    %v1339 = vunpack.c.l.b16 %v1151
    %v1340 = vunpack.c.h.b16 %v1151
    %v1341 = vunpack.c.l.b16 %v1152
    %v1342 = vunpack.c.h.b16 %v1152
    %v1343 = vunpack.c.l.b16 %v1153
    %v1344 = vunpack.c.h.b16 %v1153
    %v1345 = vunpack.c.l.b16 %v1154
    %v1346 = vunpack.c.h.b16 %v1154
    %v1347 = vunpack.c.l.b16 %v1155
    %v1348 = vunpack.c.h.b16 %v1155
    %v1349 = vunpack.c.l.b16 %v1156
    %v1350 = vunpack.c.h.b16 %v1156
    %v1351 = vunpack.c.l.b16 %v1157
    %v1352 = vunpack.c.h.b16 %v1157
    %v1353 = vunpack.c.l.b16 %v1158
    %v1354 = vunpack.c.h.b16 %v1158
    %v1355 = vunpack.c.l.b16 %v1159
    %v1356 = vunpack.c.h.b16 %v1159
    %v1357 = vunpack.c.l.b16 %v1160
    %v1358 = vunpack.c.h.b16 %v1160
    %v1359 = vpack.c.b16 %v1233, %v1231
    %v1360 = vpack.c.b16 %v1234, %v1232
    %v1361 = vpack.c.b16 %v1237, %v1235
    %v1362 = vpack.c.b16 %v1238, %v1236
    %v1363 = vpack.c.b16 %v1241, %v1239
    %v1364 = vpack.c.b16 %v1242, %v1240
    %v1365 = vpack.c.b16 %v1245, %v1243
    %v1366 = vpack.c.b16 %v1246, %v1244
    %v1367 = vpack.c.b16 %v1249, %v1247
    %v1368 = vpack.c.b16 %v1250, %v1248
    %v1369 = vpack.c.b16 %v1253, %v1251
    %v1370 = vpack.c.b16 %v1254, %v1252
    %v1371 = vpack.c.b16 %v1257, %v1255
    %v1372 = vpack.c.b16 %v1258, %v1256
    %v1373 = vpack.c.b16 %v1261, %v1259
    %v1374 = vpack.c.b16 %v1262, %v1260
    %v1375 = vpack.c.b16 %v1265, %v1263
    %v1376 = vpack.c.b16 %v1266, %v1264
    %v1377 = vpack.c.b16 %v1269, %v1267
    %v1378 = vpack.c.b16 %v1270, %v1268
    %v1379 = vpack.c.b16 %v1273, %v1271
    %v1380 = vpack.c.b16 %v1274, %v1272
    %v1381 = vpack.c.b16 %v1277, %v1275
    %v1382 = vpack.c.b16 %v1278, %v1276
    %v1383 = vpack.c.b16 %v1281, %v1279
    %v1384 = vpack.c.b16 %v1282, %v1280
    %v1385 = vpack.c.b16 %v1285, %v1283
    %v1386 = vpack.c.b16 %v1286, %v1284
    %v1387 = vpack.c.b16 %v1289, %v1287
    %v1388 = vpack.c.b16 %v1290, %v1288
    %v1389 = vpack.c.b16 %v1293, %v1291
    %v1390 = vpack.c.b16 %v1294, %v1292
    %v1391 = vpack.c.b16 %v1297, %v1295
    %v1392 = vpack.c.b16 %v1298, %v1296
    %v1393 = vpack.c.b16 %v1301, %v1299
    %v1394 = vpack.c.b16 %v1302, %v1300
    %v1395 = vpack.c.b16 %v1305, %v1303
    %v1396 = vpack.c.b16 %v1306, %v1304
    %v1397 = vpack.c.b16 %v1309, %v1307
    %v1398 = vpack.c.b16 %v1310, %v1308
    %v1399 = vpack.c.b16 %v1313, %v1311
    %v1400 = vpack.c.b16 %v1314, %v1312
    %v1401 = vpack.c.b16 %v1317, %v1315
    %v1402 = vpack.c.b16 %v1318, %v1316
    %v1403 = vpack.c.b16 %v1321, %v1319
    %v1404 = vpack.c.b16 %v1322, %v1320
    %v1405 = vpack.c.b16 %v1325, %v1323
    %v1406 = vpack.c.b16 %v1326, %v1324
    %v1407 = vpack.c.b16 %v1329, %v1327
    %v1408 = vpack.c.b16 %v1330, %v1328
    %v1409 = vpack.c.b16 %v1333, %v1331
    %v1410 = vpack.c.b16 %v1334, %v1332
    %v1411 = vpack.c.b16 %v1337, %v1335
    %v1412 = vpack.c.b16 %v1338, %v1336
    %v1413 = vpack.c.b16 %v1341, %v1339
    %v1414 = vpack.c.b16 %v1342, %v1340
    %v1415 = vpack.c.b16 %v1345, %v1343
    %v1416 = vpack.c.b16 %v1346, %v1344
    %v1417 = vpack.c.b16 %v1349, %v1347
    %v1418 = vpack.c.b16 %v1350, %v1348
    %v1419 = vpack.c.b16 %v1353, %v1351
    %v1420 = vpack.c.b16 %v1354, %v1352
    %v1421 = vpack.c.b16 %v1357, %v1355
    %v1422 = vpack.c.b16 %v1358, %v1356
    %1487 = vmatpush.bf16.msra.mxu0 %v1373
    %1488 = vmatpush.bf16.msra.mxu0 %v1371
    %1489 = vmatpush.bf16.msra.mxu0 %v1369
    %1490 = vmatpush.bf16.msra.mxu0 %v1367
    %1491 = vmatpush.bf16.msra.mxu0 %v1365
    %1492 = vmatpush.bf16.msra.mxu0 %v1363
    %1493 = vmatpush.bf16.msra.mxu0 %v1361
    %1494 = vmatpush.bf16.msra.mxu0 %v1359
    %1495 = vmatmul.bf16.gmra.mxu0 %v1065
    %v1496 = vpop.f32.mrf.mxu0
    %v1497 = vadd.f32 %v1163, %v1496
    %v1498 = vpop.f32.mrf.mxu0
    %v1499 = vadd.f32 %v1163, %v1498
    %1500 = vmatmul.bf16.gmra.mxu0 %v1069
    %v1501 = vpop.f32.mrf.mxu0
    %v1502 = vadd.f32 %v1163, %v1501
    %v1503 = vpop.f32.mrf.mxu0
    %v1504 = vadd.f32 %v1163, %v1503
    %1505 = vmatmul.bf16.gmra.mxu0 %v1073
    %v1506 = vpop.f32.mrf.mxu0
    %v1507 = vadd.f32 %v1163, %v1506
    %v1508 = vpop.f32.mrf.mxu0
    %v1509 = vadd.f32 %v1163, %v1508
    %1510 = vmatmul.bf16.gmra.mxu0 %v1077
    %v1511 = vpop.f32.mrf.mxu0
    %v1512 = vadd.f32 %v1163, %v1511
    %v1513 = vpop.f32.mrf.mxu0
    %v1514 = vadd.f32 %v1163, %v1513
    %1515 = vmatmul.bf16.gmra.mxu0 %v1081
    %v1516 = vpop.f32.mrf.mxu0
    %v1517 = vadd.f32 %v1163, %v1516
    %v1518 = vpop.f32.mrf.mxu0
    %v1519 = vadd.f32 %v1163, %v1518
    %1520 = vmatmul.bf16.gmra.mxu0 %v1085
    %v1521 = vpop.f32.mrf.mxu0
    %v1522 = vadd.f32 %v1163, %v1521
    %v1523 = vpop.f32.mrf.mxu0
    %v1524 = vadd.f32 %v1163, %v1523
    %1525 = vmatmul.bf16.gmra.mxu0 %v1089
    %v1526 = vpop.f32.mrf.mxu0
    %v1527 = vadd.f32 %v1163, %v1526
    %v1528 = vpop.f32.mrf.mxu0
    %v1529 = vadd.f32 %v1163, %v1528
    %1530 = vmatmul.bf16.gmra.mxu0 %v1093
    %v1531 = vpop.f32.mrf.mxu0
    %v1532 = vadd.f32 %v1163, %v1531
    %v1533 = vpop.f32.mrf.mxu0
    %v1534 = vadd.f32 %v1163, %v1533
    %1535 = vdwg.mxu0
    %1536 = vmatpush.bf16.msra.mxu0 %v1389
    %1537 = vmatpush.bf16.msra.mxu0 %v1387
    %1538 = vmatpush.bf16.msra.mxu0 %v1385
    %1539 = vmatpush.bf16.msra.mxu0 %v1383
    %1540 = vmatpush.bf16.msra.mxu0 %v1381
    %1541 = vmatpush.bf16.msra.mxu0 %v1379
    %1542 = vmatpush.bf16.msra.mxu0 %v1377
    %1543 = vmatpush.bf16.msra.mxu0 %v1375
    %1544 = vmatmul.bf16.gmra.mxu0 %v1066
    %v1545 = vpop.f32.mrf.mxu0
    %v1546 = vadd.f32 %v1497, %v1545
    %v1547 = vpop.f32.mrf.mxu0
    %v1548 = vadd.f32 %v1499, %v1547
    %1549 = vmatmul.bf16.gmra.mxu0 %v1070
    %v1550 = vpop.f32.mrf.mxu0
    %v1551 = vadd.f32 %v1502, %v1550
    %v1552 = vpop.f32.mrf.mxu0
    %v1553 = vadd.f32 %v1504, %v1552
    %1554 = vmatmul.bf16.gmra.mxu0 %v1074
    %v1555 = vpop.f32.mrf.mxu0
    %v1556 = vadd.f32 %v1507, %v1555
    %v1557 = vpop.f32.mrf.mxu0
    %v1558 = vadd.f32 %v1509, %v1557
    %1559 = vmatmul.bf16.gmra.mxu0 %v1078
    %v1560 = vpop.f32.mrf.mxu0
    %v1561 = vadd.f32 %v1512, %v1560
    %v1562 = vpop.f32.mrf.mxu0
    %v1563 = vadd.f32 %v1514, %v1562
    %1564 = vmatmul.bf16.gmra.mxu0 %v1082
    %v1565 = vpop.f32.mrf.mxu0
    %v1566 = vadd.f32 %v1517, %v1565
    %v1567 = vpop.f32.mrf.mxu0
    %v1568 = vadd.f32 %v1519, %v1567
    %1569 = vmatmul.bf16.gmra.mxu0 %v1086
    %v1570 = vpop.f32.mrf.mxu0
    %v1571 = vadd.f32 %v1522, %v1570
    %v1572 = vpop.f32.mrf.mxu0
    %v1573 = vadd.f32 %v1524, %v1572
    %1574 = vmatmul.bf16.gmra.mxu0 %v1090
    %v1575 = vpop.f32.mrf.mxu0
    %v1576 = vadd.f32 %v1527, %v1575
    %v1577 = vpop.f32.mrf.mxu0
    %v1578 = vadd.f32 %v1529, %v1577
    %1579 = vmatmul.bf16.gmra.mxu0 %v1094
    %v1580 = vpop.f32.mrf.mxu0
    %v1581 = vadd.f32 %v1532, %v1580
    %v1582 = vpop.f32.mrf.mxu0
    %v1583 = vadd.f32 %v1534, %v1582
    %1584 = vdwg.mxu0
    %1585 = vmatpush.bf16.msra.mxu0 %v1405
    %1586 = vmatpush.bf16.msra.mxu0 %v1403
    %1587 = vmatpush.bf16.msra.mxu0 %v1401
    %1588 = vmatpush.bf16.msra.mxu0 %v1399
    %1589 = vmatpush.bf16.msra.mxu0 %v1397
    %1590 = vmatpush.bf16.msra.mxu0 %v1395
    %1591 = vmatpush.bf16.msra.mxu0 %v1393
    %1592 = vmatpush.bf16.msra.mxu0 %v1391
    %1593 = vmatmul.bf16.gmra.mxu0 %v1067
    %v1594 = vpop.f32.mrf.mxu0
    %v1595 = vadd.f32 %v1546, %v1594
    %v1596 = vpop.f32.mrf.mxu0
    %v1597 = vadd.f32 %v1548, %v1596
    %1598 = vmatmul.bf16.gmra.mxu0 %v1071
    %v1599 = vpop.f32.mrf.mxu0
    %v1600 = vadd.f32 %v1551, %v1599
    %v1601 = vpop.f32.mrf.mxu0
    %v1602 = vadd.f32 %v1553, %v1601
    %1603 = vmatmul.bf16.gmra.mxu0 %v1075
    %v1604 = vpop.f32.mrf.mxu0
    %v1605 = vadd.f32 %v1556, %v1604
    %v1606 = vpop.f32.mrf.mxu0
    %v1607 = vadd.f32 %v1558, %v1606
    %1608 = vmatmul.bf16.gmra.mxu0 %v1079
    %v1609 = vpop.f32.mrf.mxu0
    %v1610 = vadd.f32 %v1561, %v1609
    %v1611 = vpop.f32.mrf.mxu0
    %v1612 = vadd.f32 %v1563, %v1611
    %1613 = vmatmul.bf16.gmra.mxu0 %v1083
    %v1614 = vpop.f32.mrf.mxu0
    %v1615 = vadd.f32 %v1566, %v1614
    %v1616 = vpop.f32.mrf.mxu0
    %v1617 = vadd.f32 %v1568, %v1616
    %1618 = vmatmul.bf16.gmra.mxu0 %v1087
    %v1619 = vpop.f32.mrf.mxu0
    %v1620 = vadd.f32 %v1571, %v1619
    %v1621 = vpop.f32.mrf.mxu0
    %v1622 = vadd.f32 %v1573, %v1621
    %1623 = vmatmul.bf16.gmra.mxu0 %v1091
    %v1624 = vpop.f32.mrf.mxu0
    %v1625 = vadd.f32 %v1576, %v1624
    %v1626 = vpop.f32.mrf.mxu0
    %v1627 = vadd.f32 %v1578, %v1626
    %1628 = vmatmul.bf16.gmra.mxu0 %v1095
    %v1629 = vpop.f32.mrf.mxu0
    %v1630 = vadd.f32 %v1581, %v1629
    %v1631 = vpop.f32.mrf.mxu0
    %v1632 = vadd.f32 %v1583, %v1631
    %1633 = vdwg.mxu0
    %1634 = vmatpush.bf16.msra.mxu0 %v1421
    %1635 = vmatpush.bf16.msra.mxu0 %v1419
    %1636 = vmatpush.bf16.msra.mxu0 %v1417
    %1637 = vmatpush.bf16.msra.mxu0 %v1415
    %1638 = vmatpush.bf16.msra.mxu0 %v1413
    %1639 = vmatpush.bf16.msra.mxu0 %v1411
    %1640 = vmatpush.bf16.msra.mxu0 %v1409
    %1641 = vmatpush.bf16.msra.mxu0 %v1407
    %1642 = vmatmul.bf16.gmra.mxu0 %v1068
    %v1643 = vpop.f32.mrf.mxu0
    %v1644 = vadd.f32 %v1595, %v1643
    %v1645 = vpop.f32.mrf.mxu0
    %v1646 = vadd.f32 %v1597, %v1645
    %1647 = vmatmul.bf16.gmra.mxu0 %v1072
    %v1648 = vpop.f32.mrf.mxu0
    %v1649 = vadd.f32 %v1600, %v1648
    %v1650 = vpop.f32.mrf.mxu0
    %v1651 = vadd.f32 %v1602, %v1650
    %1652 = vmatmul.bf16.gmra.mxu0 %v1076
    %v1653 = vpop.f32.mrf.mxu0
    %v1654 = vadd.f32 %v1605, %v1653
    %v1655 = vpop.f32.mrf.mxu0
    %v1656 = vadd.f32 %v1607, %v1655
    %1657 = vmatmul.bf16.gmra.mxu0 %v1080
    %v1658 = vpop.f32.mrf.mxu0
    %v1659 = vadd.f32 %v1610, %v1658
    %v1660 = vpop.f32.mrf.mxu0
    %v1661 = vadd.f32 %v1612, %v1660
    %1662 = vmatmul.bf16.gmra.mxu0 %v1084
    %v1663 = vpop.f32.mrf.mxu0
    %v1664 = vadd.f32 %v1615, %v1663
    %v1665 = vpop.f32.mrf.mxu0
    %v1666 = vadd.f32 %v1617, %v1665
    %1667 = vmatmul.bf16.gmra.mxu0 %v1088
    %v1668 = vpop.f32.mrf.mxu0
    %v1669 = vadd.f32 %v1620, %v1668
    %v1670 = vpop.f32.mrf.mxu0
    %v1671 = vadd.f32 %v1622, %v1670
    %1672 = vmatmul.bf16.gmra.mxu0 %v1092
    %v1673 = vpop.f32.mrf.mxu0
    %v1674 = vadd.f32 %v1625, %v1673
    %v1675 = vpop.f32.mrf.mxu0
    %v1676 = vadd.f32 %v1627, %v1675
    %1677 = vmatmul.bf16.gmra.mxu0 %v1096
    %v1678 = vpop.f32.mrf.mxu0
    %v1679 = vadd.f32 %v1630, %v1678
    %v1680 = vpop.f32.mrf.mxu0
    %v1681 = vadd.f32 %v1632, %v1680
    %1682 = vdwg.mxu0
    %1683 = vmatpush.bf16.msra.mxu0 %v1374
    %1684 = vmatpush.bf16.msra.mxu0 %v1372
    %1685 = vmatpush.bf16.msra.mxu0 %v1370
    %1686 = vmatpush.bf16.msra.mxu0 %v1368
    %1687 = vmatpush.bf16.msra.mxu0 %v1366
    %1688 = vmatpush.bf16.msra.mxu0 %v1364
    %1689 = vmatpush.bf16.msra.mxu0 %v1362
    %1690 = vmatpush.bf16.msra.mxu0 %v1360
    %1691 = vmatmul.bf16.gmra.mxu0 %v1065
    %v1692 = vpop.f32.mrf.mxu0
    %v1693 = vadd.f32 %v1164, %v1692
    %v1694 = vpop.f32.mrf.mxu0
    %v1695 = vadd.f32 %v1164, %v1694
    %1696 = vmatmul.bf16.gmra.mxu0 %v1069
    %v1697 = vpop.f32.mrf.mxu0
    %v1698 = vadd.f32 %v1164, %v1697
    %v1699 = vpop.f32.mrf.mxu0
    %v1700 = vadd.f32 %v1164, %v1699
    %1701 = vmatmul.bf16.gmra.mxu0 %v1073
    %v1702 = vpop.f32.mrf.mxu0
    %v1703 = vadd.f32 %v1164, %v1702
    %v1704 = vpop.f32.mrf.mxu0
    %v1705 = vadd.f32 %v1164, %v1704
    %1706 = vmatmul.bf16.gmra.mxu0 %v1077
    %v1707 = vpop.f32.mrf.mxu0
    %v1708 = vadd.f32 %v1164, %v1707
    %v1709 = vpop.f32.mrf.mxu0
    %v1710 = vadd.f32 %v1164, %v1709
    %1711 = vmatmul.bf16.gmra.mxu0 %v1081
    %v1712 = vpop.f32.mrf.mxu0
    %v1713 = vadd.f32 %v1164, %v1712
    %v1714 = vpop.f32.mrf.mxu0
    %v1715 = vadd.f32 %v1164, %v1714
    %1716 = vmatmul.bf16.gmra.mxu0 %v1085
    %v1717 = vpop.f32.mrf.mxu0
    %v1718 = vadd.f32 %v1164, %v1717
    %v1719 = vpop.f32.mrf.mxu0
    %v1720 = vadd.f32 %v1164, %v1719
    %1721 = vmatmul.bf16.gmra.mxu0 %v1089
    %v1722 = vpop.f32.mrf.mxu0
    %v1723 = vadd.f32 %v1164, %v1722
    %v1724 = vpop.f32.mrf.mxu0
    %v1725 = vadd.f32 %v1164, %v1724
    %1726 = vmatmul.bf16.gmra.mxu0 %v1093
    %v1727 = vpop.f32.mrf.mxu0
    %v1728 = vadd.f32 %v1164, %v1727
    %v1729 = vpop.f32.mrf.mxu0
    %v1730 = vadd.f32 %v1164, %v1729
    %1731 = vdwg.mxu0
    %1732 = vmatpush.bf16.msra.mxu0 %v1390
    %1733 = vmatpush.bf16.msra.mxu0 %v1388
    %1734 = vmatpush.bf16.msra.mxu0 %v1386
    %1735 = vmatpush.bf16.msra.mxu0 %v1384
    %1736 = vmatpush.bf16.msra.mxu0 %v1382
    %1737 = vmatpush.bf16.msra.mxu0 %v1380
    %1738 = vmatpush.bf16.msra.mxu0 %v1378
    %1739 = vmatpush.bf16.msra.mxu0 %v1376
    %1740 = vmatmul.bf16.gmra.mxu0 %v1066
    %v1741 = vpop.f32.mrf.mxu0
    %v1742 = vadd.f32 %v1693, %v1741
    %v1743 = vpop.f32.mrf.mxu0
    %v1744 = vadd.f32 %v1695, %v1743
    %1745 = vmatmul.bf16.gmra.mxu0 %v1070
    %v1746 = vpop.f32.mrf.mxu0
    %v1747 = vadd.f32 %v1698, %v1746
    %v1748 = vpop.f32.mrf.mxu0
    %v1749 = vadd.f32 %v1700, %v1748
    %1750 = vmatmul.bf16.gmra.mxu0 %v1074
    %v1751 = vpop.f32.mrf.mxu0
    %v1752 = vadd.f32 %v1703, %v1751
    %v1753 = vpop.f32.mrf.mxu0
    %v1754 = vadd.f32 %v1705, %v1753
    %1755 = vmatmul.bf16.gmra.mxu0 %v1078
    %v1756 = vpop.f32.mrf.mxu0
    %v1757 = vadd.f32 %v1708, %v1756
    %v1758 = vpop.f32.mrf.mxu0
    %v1759 = vadd.f32 %v1710, %v1758
    %1760 = vmatmul.bf16.gmra.mxu0 %v1082
    %v1761 = vpop.f32.mrf.mxu0
    %v1762 = vadd.f32 %v1713, %v1761
    %v1763 = vpop.f32.mrf.mxu0
    %v1764 = vadd.f32 %v1715, %v1763
    %1765 = vmatmul.bf16.gmra.mxu0 %v1086
    %v1766 = vpop.f32.mrf.mxu0
    %v1767 = vadd.f32 %v1718, %v1766
    %v1768 = vpop.f32.mrf.mxu0
    %v1769 = vadd.f32 %v1720, %v1768
    %1770 = vmatmul.bf16.gmra.mxu0 %v1090
    %v1771 = vpop.f32.mrf.mxu0
    %v1772 = vadd.f32 %v1723, %v1771
    %v1773 = vpop.f32.mrf.mxu0
    %v1774 = vadd.f32 %v1725, %v1773
    %1775 = vmatmul.bf16.gmra.mxu0 %v1094
    %v1776 = vpop.f32.mrf.mxu0
    %v1777 = vadd.f32 %v1728, %v1776
    %v1778 = vpop.f32.mrf.mxu0
    %v1779 = vadd.f32 %v1730, %v1778
    %1780 = vdwg.mxu0
    %1781 = vmatpush.bf16.msra.mxu0 %v1406
    %1782 = vmatpush.bf16.msra.mxu0 %v1404
    %1783 = vmatpush.bf16.msra.mxu0 %v1402
    %1784 = vmatpush.bf16.msra.mxu0 %v1400
    %1785 = vmatpush.bf16.msra.mxu0 %v1398
    %1786 = vmatpush.bf16.msra.mxu0 %v1396
    %1787 = vmatpush.bf16.msra.mxu0 %v1394
    %1788 = vmatpush.bf16.msra.mxu0 %v1392
    %1789 = vmatmul.bf16.gmra.mxu0 %v1067
    %v1790 = vpop.f32.mrf.mxu0
    %v1791 = vadd.f32 %v1742, %v1790
    %v1792 = vpop.f32.mrf.mxu0
    %v1793 = vadd.f32 %v1744, %v1792
    %1794 = vmatmul.bf16.gmra.mxu0 %v1071
    %v1795 = vpop.f32.mrf.mxu0
    %v1796 = vadd.f32 %v1747, %v1795
    %v1797 = vpop.f32.mrf.mxu0
    %v1798 = vadd.f32 %v1749, %v1797
    %1799 = vmatmul.bf16.gmra.mxu0 %v1075
    %v1800 = vpop.f32.mrf.mxu0
    %v1801 = vadd.f32 %v1752, %v1800
    %v1802 = vpop.f32.mrf.mxu0
    %v1803 = vadd.f32 %v1754, %v1802
    %1804 = vmatmul.bf16.gmra.mxu0 %v1079
    %v1805 = vpop.f32.mrf.mxu0
    %v1806 = vadd.f32 %v1757, %v1805
    %v1807 = vpop.f32.mrf.mxu0
    %v1808 = vadd.f32 %v1759, %v1807
    %1809 = vmatmul.bf16.gmra.mxu0 %v1083
    %v1810 = vpop.f32.mrf.mxu0
    %v1811 = vadd.f32 %v1762, %v1810
    %v1812 = vpop.f32.mrf.mxu0
    %v1813 = vadd.f32 %v1764, %v1812
    %1814 = vmatmul.bf16.gmra.mxu0 %v1087
    %v1815 = vpop.f32.mrf.mxu0
    %v1816 = vadd.f32 %v1767, %v1815
    %v1817 = vpop.f32.mrf.mxu0
    %v1818 = vadd.f32 %v1769, %v1817
    %1819 = vmatmul.bf16.gmra.mxu0 %v1091
    %v1820 = vpop.f32.mrf.mxu0
    %v1821 = vadd.f32 %v1772, %v1820
    %v1822 = vpop.f32.mrf.mxu0
    %v1823 = vadd.f32 %v1774, %v1822
    %1824 = vmatmul.bf16.gmra.mxu0 %v1095
    %v1825 = vpop.f32.mrf.mxu0
    %v1826 = vadd.f32 %v1777, %v1825
    %v1827 = vpop.f32.mrf.mxu0
    %v1828 = vadd.f32 %v1779, %v1827
    %1829 = vdwg.mxu0
    %1830 = vmatpush.bf16.msra.mxu0 %v1422
    %1831 = vmatpush.bf16.msra.mxu0 %v1420
    %1832 = vmatpush.bf16.msra.mxu0 %v1418
    %1833 = vmatpush.bf16.msra.mxu0 %v1416
    %1834 = vmatpush.bf16.msra.mxu0 %v1414
    %1835 = vmatpush.bf16.msra.mxu0 %v1412
    %1836 = vmatpush.bf16.msra.mxu0 %v1410
    %1837 = vmatpush.bf16.msra.mxu0 %v1408
    %1838 = vmatmul.bf16.gmra.mxu0 %v1068
    %v1839 = vpop.f32.mrf.mxu0
    %v1840 = vadd.f32 %v1791, %v1839
    %v1841 = vpop.f32.mrf.mxu0
    %v1842 = vadd.f32 %v1793, %v1841
    %1843 = vmatmul.bf16.gmra.mxu0 %v1072
    %v1844 = vpop.f32.mrf.mxu0
    %v1845 = vadd.f32 %v1796, %v1844
    %v1846 = vpop.f32.mrf.mxu0
    %v1847 = vadd.f32 %v1798, %v1846
    %1848 = vmatmul.bf16.gmra.mxu0 %v1076
    %v1849 = vpop.f32.mrf.mxu0
    %v1850 = vadd.f32 %v1801, %v1849
    %v1851 = vpop.f32.mrf.mxu0
    %v1852 = vadd.f32 %v1803, %v1851
    %1853 = vmatmul.bf16.gmra.mxu0 %v1080
    %v1854 = vpop.f32.mrf.mxu0
    %v1855 = vadd.f32 %v1806, %v1854
    %v1856 = vpop.f32.mrf.mxu0
    %v1857 = vadd.f32 %v1808, %v1856
    %1858 = vmatmul.bf16.gmra.mxu0 %v1084
    %v1859 = vpop.f32.mrf.mxu0
    %v1860 = vadd.f32 %v1811, %v1859
    %v1861 = vpop.f32.mrf.mxu0
    %v1862 = vadd.f32 %v1813, %v1861
    %1863 = vmatmul.bf16.gmra.mxu0 %v1088
    %v1864 = vpop.f32.mrf.mxu0
    %v1865 = vadd.f32 %v1816, %v1864
    %v1866 = vpop.f32.mrf.mxu0
    %v1867 = vadd.f32 %v1818, %v1866
    %1868 = vmatmul.bf16.gmra.mxu0 %v1092
    %v1869 = vpop.f32.mrf.mxu0
    %v1870 = vadd.f32 %v1821, %v1869
    %v1871 = vpop.f32.mrf.mxu0
    %v1872 = vadd.f32 %v1823, %v1871
    %1873 = vmatmul.bf16.gmra.mxu0 %v1096
    %v1874 = vpop.f32.mrf.mxu0
    %v1875 = vadd.f32 %v1826, %v1874
    %v1876 = vpop.f32.mrf.mxu0
    %v1877 = vadd.f32 %v1828, %v1876
    %1878 = vdwg.mxu0
    %v1879 = vmul.f32 %v1644, 0.2
    %v1880 = vmul.f32 %v1840, 0.2
    %v1881 = vmul.f32 %v1646, 0.2
    %v1882 = vmul.f32 %v1842, 0.2
    %v1883 = vmul.f32 %v1649, 0.2
    %v1884 = vmul.f32 %v1845, 0.2
    %v1885 = vmul.f32 %v1651, 0.2
    %v1886 = vmul.f32 %v1847, 0.2
    %v1887 = vmul.f32 %v1654, 0.2
    %v1888 = vmul.f32 %v1850, 0.2
    %v1889 = vmul.f32 %v1656, 0.2
    %v1890 = vmul.f32 %v1852, 0.2
    %v1891 = vmul.f32 %v1659, 0.2
    %v1892 = vmul.f32 %v1855, 0.2
    %v1893 = vmul.f32 %v1661, 0.2
    %v1894 = vmul.f32 %v1857, 0.2
    %v1895 = vmul.f32 %v1664, 0.2
    %v1896 = vmul.f32 %v1860, 0.2
    %v1897 = vmul.f32 %v1666, 0.2
    %v1898 = vmul.f32 %v1862, 0.2
    %v1899 = vmul.f32 %v1669, 0.2
    %v1900 = vmul.f32 %v1865, 0.2
    %v1901 = vmul.f32 %v1671, 0.2
    %v1902 = vmul.f32 %v1867, 0.2
    %v1903 = vmul.f32 %v1674, 0.2
    %v1904 = vmul.f32 %v1870, 0.2
    %v1905 = vmul.f32 %v1676, 0.2
    %v1906 = vmul.f32 %v1872, 0.2
    %v1907 = vmul.f32 %v1679, 0.2
    %v1908 = vmul.f32 %v1875, 0.2
    %v1909 = vmul.f32 %v1681, 0.2
    %v1910 = vmul.f32 %v1877, 0.2
    %v1911 = vmax.f32 %v1644, %v1879
    %v1912 = vmax.f32 %v1840, %v1880
    %v1913 = vmax.f32 %v1646, %v1881
    %v1914 = vmax.f32 %v1842, %v1882
    %v1915 = vmax.f32 %v1649, %v1883
    %v1916 = vmax.f32 %v1845, %v1884
    %v1917 = vmax.f32 %v1651, %v1885
    %v1918 = vmax.f32 %v1847, %v1886
    %v1919 = vmax.f32 %v1654, %v1887
    %v1920 = vmax.f32 %v1850, %v1888
    %v1921 = vmax.f32 %v1656, %v1889
    %v1922 = vmax.f32 %v1852, %v1890
    %v1923 = vmax.f32 %v1659, %v1891
    %v1924 = vmax.f32 %v1855, %v1892
    %v1925 = vmax.f32 %v1661, %v1893
    %v1926 = vmax.f32 %v1857, %v1894
    %v1927 = vmax.f32 %v1664, %v1895
    %v1928 = vmax.f32 %v1860, %v1896
    %v1929 = vmax.f32 %v1666, %v1897
    %v1930 = vmax.f32 %v1862, %v1898
    %v1931 = vmax.f32 %v1669, %v1899
    %v1932 = vmax.f32 %v1865, %v1900
    %v1933 = vmax.f32 %v1671, %v1901
    %v1934 = vmax.f32 %v1867, %v1902
    %v1935 = vmax.f32 %v1674, %v1903
    %v1936 = vmax.f32 %v1870, %v1904
    %v1937 = vmax.f32 %v1676, %v1905
    %v1938 = vmax.f32 %v1872, %v1906
    %v1939 = vmax.f32 %v1679, %v1907
    %v1940 = vmax.f32 %v1875, %v1908
    %v1941 = vmax.f32 %v1681, %v1909
    %v1942 = vmax.f32 %v1877, %v1910
    %v1943 = vld [vmem:[#allocation11] sm:$0xff]
    %v1944 = vld [vmem:[#allocation11 + $0x8] sm:$0xff]
    %1945 = vmatpush.xpose.msra.mxu0 %v1941
    %1946 = vmatpush.xpose.msra.mxu0 %v1939
    %1947 = vmatpush.xpose.msra.mxu0 %v1937
    %1948 = vmatpush.xpose.msra.mxu0 %v1935
    %1949 = vmatpush.xpose.msra.mxu0 %v1933
    %1950 = vmatpush.xpose.msra.mxu0 %v1931
    %1951 = vmatpush.xpose.msra.mxu0 %v1929
    %1952 = vmatpush.xpose.msra.mxu0 %v1927
    %1953 = vmatpush.xpose.msra.mxu0 %v1925
    %1954 = vmatpush.xpose.msra.mxu0 %v1923
    %1955 = vmatpush.xpose.msra.mxu0 %v1921
    %1956 = vmatpush.xpose.msra.mxu0 %v1919
    %1957 = vmatpush.xpose.msra.mxu0 %v1917
    %1958 = vmatpush.xpose.msra.mxu0 %v1915
    %1959 = vmatpush.xpose.msra.mxu0 %v1913
    %1960 = vmatpush.xpose.msra.mxu0 %v1911
    %1961 = vmatmul.f32.gmra.mxu0 %v1943
    %v1962 = vpop.f32.mrf.mxu0
    %v1963 = vadd.f32 0.0, %v1962
    %1964 = vdwg.mxu0
    %1965 = vmatpush.xpose.msra.mxu0 %v1942
    %1966 = vmatpush.xpose.msra.mxu0 %v1940
    %1967 = vmatpush.xpose.msra.mxu0 %v1938
    %1968 = vmatpush.xpose.msra.mxu0 %v1936
    %1969 = vmatpush.xpose.msra.mxu0 %v1934
    %1970 = vmatpush.xpose.msra.mxu0 %v1932
    %1971 = vmatpush.xpose.msra.mxu0 %v1930
    %1972 = vmatpush.xpose.msra.mxu0 %v1928
    %1973 = vmatpush.xpose.msra.mxu0 %v1926
    %1974 = vmatpush.xpose.msra.mxu0 %v1924
    %1975 = vmatpush.xpose.msra.mxu0 %v1922
    %1976 = vmatpush.xpose.msra.mxu0 %v1920
    %1977 = vmatpush.xpose.msra.mxu0 %v1918
    %1978 = vmatpush.xpose.msra.mxu0 %v1916
    %1979 = vmatpush.xpose.msra.mxu0 %v1914
    %1980 = vmatpush.xpose.msra.mxu0 %v1912
    %1981 = vmatmul.f32.gmra.mxu0 %v1944
    %v1982 = vpop.f32.mrf.mxu0
    %v1983 = vadd.f32 %v1963, %v1982
    %1984 = vdwg.mxu0
    %v1985 = vld [vmem:[#allocation2] sm:$0x1]
    %1987 = vset.pattern.permute.xlu0 0
    %1988 = vperm.xlu0 %1987, %v1985
    %v1989 = vpop.permute.xlu0 %1988
    %v1991 = vperm.slane %v1989, 0
    %v1992 = vadd.f32 %v1983, %v1991
    %v1993 = vsub.f32 0.0, %v1992
    %v1994 = vmul.f32 %v1993, 1.442695
    %v1995 = vpow.pop %v1994
    %v1996 = vadd.f32 %v1995, 1.0
    %v1997 = vrcp.pop %v1996
    %v1998 = vmul.f32 %v1996, %v1997
    %v1999 = vsub.f32 1.0, %v1998
    %v2000 = vmul.f32 %v1997, %v1999
    %v2001 = vadd.f32 %v1997, %v2000
    %vm2002 = vweird.f32 %v1996
    %vm2003 = vweird.f32 %v1997
    %vm2004 = vmor %vm2002, %vm2003
    %v2005 = vsel %vm2004, %v1997, %v2001
    %v2006 = vand.u32 2147483647, %v1996
    %vm2007 = vcmp.eq.f32.partialorder %v2006, 8.507059e+37
    %v2008 = vand.u32 %v1996, 2147483648
    %v2009 = vor.u32 1.1754944e-38, %v2008
    %v2010 = vsel %vm2007, %v2009, %v2005
    %v2011 = vmul.f32 1.0, %v2010
    %2012 = vst [vmem:[#allocation12] sm:$0x1] %v2011
    // Predicated region
    $region50: #{tpu_custom_call.1} parent=1 // pred_check
      _
    $region51: #{tpu_custom_call.1} parent=1 // pred_check_branch
      %2014 = sbr.rel (0) target = $region53
    $region52: #{tpu_custom_call.1} parent=1 // pred_region
      %2016 = vsyncadd [#allocation5], 0
      %s2018 = sshll.u32 [#allocation12], 4
      %s2019 = int_to_ptr.vmem [resolvable:$true] %s2018
      %s2020 = sshll.u32 %s7, 4
      %s2021 = int_to_ptr.hbm [resolvable:$true] %s2020
      %2023 = dma.vmem_to_hbm [thread:$0]  %s2019, 16, %s2021, [#allocation5]
    $region53: #{tpu_custom_call.1} parent=1 // pred_fallthru
      _
    // Predicated region
    $region54: #{tpu_custom_call.1} parent=1 // pred_check
      _
    $region55: #{tpu_custom_call.1} parent=1 // pred_check_branch
      %2025 = sbr.rel (0) target = $region57
    $region56: #{tpu_custom_call.1} parent=1 // pred_region
      %2027 = dma.done [#allocation5], 16
    $region57: #{tpu_custom_call.1} parent=1 // pred_fallthru
      _
    %2028 = vsyncpa [#allocation4], 1
    %2029 = vsyncpa [#allocation7], 1
    %2030 = vsyncpa [#allocation10], 1
    %2031 = vsyncpa [#allocation5], 1

</llo_original>
